<compile_context>
chip_gen: v5e
topology: v5e:2x2
jax: 0.10.0
libtpu: 0.0.40
codegen_flags: <defaults>
</compile_context>

<pallas_src>
import jax
import jax.numpy as jnp
import numpy as np
from jax import lax
from jax.experimental import pallas as pl
from jax.experimental.pallas import tpu as pltpu

LANE = 128           # lane-dense channel padding target for kernel outputs
MAX_TILE_ROWS = 512  # max rows (th * Wo) of the flattened tile fed to one MXU pass


# ----------------------------- small helpers ------------------------------- #

def _round_up(v, m):
    return ((v + m - 1) // m) * m


def _pad_axis(a, axis, target):
    if a.shape[axis] == target:
        return a
    pads = [(0, 0)] * a.ndim
    pads[axis] = (0, target - a.shape[axis])
    return jnp.pad(a, pads)


def _compiler_params():
    try:
        kind = jax.devices()[0].device_kind.lower()
    except Exception:
        kind = ""
    if "v7" in kind or "7x" in kind:
        vmem = 44 * 1024 * 1024       # v7x: 64 MiB physical VMEM -> leave headroom
    elif "v5" in kind or "v6" in kind:
        vmem = 96 * 1024 * 1024       # v5e/v6e: 128 MiB physical VMEM
    else:
        vmem = 32 * 1024 * 1024       # safe default
    return pltpu.CompilerParams(
        dimension_semantics=("parallel", "parallel"),
        vmem_limit_bytes=vmem,
    )


def _choose_row_tile(n, ho, wo, max_rows=MAX_TILE_ROWS, min_steps=8):
    """Largest divisor of Ho whose tile fits the row budget and yields >= min_steps
    grid steps (so both v7x TensorCores get several pipelined steps)."""
    divs = [d for d in range(1, ho + 1) if ho % d == 0]
    for d in reversed(divs):
        if d * wo <= max_rows and n * (ho // d) >= min_steps:
            return d
    for d in reversed(divs):
        if d * wo <= max_rows:
            return d
    return 1


# ----------------------------- Pallas kernels ------------------------------ #

def _make_fused_conv_kernel(*, th, wo, stride, relu, res_mode):
    """Fused 3x3 conv (+BN bias) [+ residual add / fused 1x1 projection] [+ ReLU].

    Taps are read with in-kernel shifted slices of the resident padded image
    (stride 1) or of the four stride-phase images (stride 2); 9 MXU dots are
    accumulated in f32, so no im2col patches ever touch HBM.
    """

    def accumulate(x_refs, w_ref, r0):
        acc = None
        for t in range(9):
            dy, dx = divmod(t, 3)
            if stride == 2:
                src = x_refs[(dy % 2) * 2 + (dx % 2)]
                tap = src[0, pl.ds(r0 + dy // 2, th), pl.ds(dx // 2, wo), :]
            else:
                tap = x_refs[0][0, pl.ds(r0 + dy, th), pl.ds(dx, wo), :]
            d = jnp.dot(tap.reshape(th * wo, tap.shape[-1]), w_ref[t],
                        preferred_element_type=jnp.float32)
            acc = d if acc is None else acc + d
        return acc

    def finalize(acc, o_ref):
        if relu:
            acc = jnp.maximum(acc, 0.0)
        o_ref[0] = acc.reshape(th, wo, -1).astype(o_ref.dtype)

    if res_mode is None and stride == 1:
        def kernel(x_ref, w_ref, b_ref, o_ref):
            r0 = pl.program_id(1) * th
            acc = accumulate((x_ref,), w_ref, r0) + b_ref[...]
            finalize(acc, o_ref)
    elif res_mode is None:  # stride == 2, phase-decomposed input
        def kernel(p00_ref, p01_ref, p10_ref, p11_ref, w_ref, b_ref, o_ref):
            r0 = pl.program_id(1) * th
            acc = accumulate((p00_ref, p01_ref, p10_ref, p11_ref), w_ref, r0)
            finalize(acc + b_ref[...], o_ref)
    elif res_mode == "identity":  # conv2: + identity shortcut (stride == 1)
        def kernel(x_ref, res_ref, w_ref, b_ref, o_ref):
            r0 = pl.program_id(1) * th
            acc = accumulate((x_ref,), w_ref, r0) + b_ref[...]
            acc = acc + res_ref[0].reshape(th * wo, -1).astype(jnp.float32)
            finalize(acc, o_ref)
    else:  # "project": conv2 + fused 1x1 downsample shortcut (stride == 1)
        def kernel(x_ref, xs_ref, w_ref, wd_ref, b_ref, o_ref):
            r0 = pl.program_id(1) * th
            acc = accumulate((x_ref,), w_ref, r0)
            xs = xs_ref[0].reshape(th * wo, xs_ref.shape[-1])
            acc = acc + jnp.dot(xs, wd_ref[...], preferred_element_type=jnp.float32)
            acc = acc + b_ref[...]               # b2 + bd pre-summed
            finalize(acc, o_ref)

    return kernel


def _fused_conv(x_imgs, w, b, *, ho, wo, th, stride, relu,
                res=None, res_mode=None, wd=None, out_dtype=jnp.bfloat16):
    n = x_imgs[0].shape[0]
    cout_p = w.shape[-1]
    grid = (n, ho // th)

    def resident_spec(arr):
        blk = (1,) + arr.shape[1:]
        return pl.BlockSpec(blk, lambda i, j: (i, 0, 0, 0))

    in_arrays = list(x_imgs)
    in_specs = [resident_spec(a) for a in x_imgs]
    if res_mode is not None:
        in_arrays.append(res)
        in_specs.append(pl.BlockSpec((1, th, wo, res.shape[-1]),
                                     lambda i, j: (i, j, 0, 0)))
    in_arrays.append(w)
    in_specs.append(pl.BlockSpec(w.shape, lambda i, j: (0, 0, 0)))
    if res_mode == "project":
        in_arrays.append(wd)
        in_specs.append(pl.BlockSpec(wd.shape, lambda i, j: (0, 0)))
    in_arrays.append(b)
    in_specs.append(pl.BlockSpec(b.shape, lambda i, j: (0, 0)))

    kernel = _make_fused_conv_kernel(th=th, wo=wo, stride=stride,
                                     relu=relu, res_mode=res_mode)
    return pl.pallas_call(
        kernel,
        out_shape=jax.ShapeDtypeStruct((n, ho, wo, cout_p), out_dtype),
        grid=grid,
        in_specs=in_specs,
        out_specs=pl.BlockSpec((1, th, wo, cout_p), lambda i, j: (i, j, 0, 0)),
        compiler_params=_compiler_params(),
    )(*in_arrays)


# ----------------------------- parameters ---------------------------------- #

def init_basic_block(key, c_in, c_out, stride=1):
    """Raw, PyTorch-layout parameters (used by both kernel path and reference)."""
    ks = jax.random.split(key, 6)

    def bn(k, c):
        kg, kb, km, kv = jax.random.split(k, 4)
        return {
            "gamma": 1.0 + 0.1 * jax.random.normal(kg, (c,), jnp.float32),
            "beta": 0.1 * jax.random.normal(kb, (c,), jnp.float32),
            "mean": 0.1 * jax.random.normal(km, (c,), jnp.float32),
            "var": jnp.abs(jax.random.normal(kv, (c,), jnp.float32)) + 0.5,
        }

    raw = {
        "conv1_w": 0.1 * jax.random.normal(ks[0], (c_out, c_in, 3, 3), jnp.float32),
        "bn1": bn(ks[1], c_out),
        "conv2_w": 0.1 * jax.random.normal(ks[2], (c_out, c_out, 3, 3), jnp.float32),
        "bn2": bn(ks[3], c_out),
    }
    if stride != 1 or c_in != c_out:
        raw["down_w"] = 0.1 * jax.random.normal(ks[4], (c_out, c_in, 1, 1), jnp.float32)
        raw["bn_d"] = bn(ks[5], c_out)
    return raw


def prepare_params(raw, eps=1e-5):
    """Fold BN scale into conv weights (per-tap layout), pad lanes, cast bf16."""
    def bn_fold(bn):
        scale = bn["gamma"] / jnp.sqrt(bn["var"] + eps)
        return scale, bn["beta"] - bn["mean"] * scale

    c_mid, c_in = raw["conv1_w"].shape[:2]
    c_out = raw["conv2_w"].shape[0]
    cm_p = _round_up(c_mid, LANE)
    co_p = _round_up(c_out, LANE)

    def fold3x3(w_pt, scale, k_pad, c_pad):
        # (cout, cin, 3, 3) -> (9, cin, cout) * scale, zero-pad K rows / out cols
        cout, cin = w_pt.shape[:2]
        wt = jnp.transpose(w_pt, (2, 3, 1, 0)).reshape(9, cin, cout) * scale[None, None, :]
        wt = jnp.pad(wt, ((0, 0), (0, k_pad - cin), (0, c_pad - cout)))
        return wt.astype(jnp.bfloat16)

    s1, b1 = bn_fold(raw["bn1"])
    s2, b2 = bn_fold(raw["bn2"])

    kp = {
        "c_in": c_in, "c_mid": c_mid, "c_out": c_out,
        "cm_p": cm_p, "co_p": co_p,
        "w1": fold3x3(raw["conv1_w"], s1, c_in, cm_p),   # (9, c_in, cm_p)
        "b1": jnp.pad(b1, (0, cm_p - c_mid)).reshape(1, cm_p).astype(jnp.float32),
        "w2": fold3x3(raw["conv2_w"], s2, cm_p, co_p),   # (9, cm_p, co_p)
        "proj": "down_w" in raw,
    }
    b2p = jnp.pad(b2, (0, co_p - c_out))
    if kp["proj"]:
        sd, bd = bn_fold(raw["bn_d"])
        wd = raw["down_w"][:, :, 0, 0].T * sd[None, :]   # (c_in, c_out)
        kp["wd"] = jnp.pad(wd, ((0, 0), (0, co_p - c_out))).astype(jnp.bfloat16)
        b2p = b2p + jnp.pad(bd, (0, co_p - c_out))       # fold bd into the bias
    kp["b2"] = b2p.reshape(1, co_p).astype(jnp.float32)
    return kp


# ----------------------------- forward pass -------------------------------- #

def basic_block_forward(kp, x_nchw, stride):
    assert stride in (1, 2)  # TODO(synk): only stride 1/2 (as BasicBlock uses)
    # TODO(synk): hoist NCHW<->NHWC + cast to the network boundary when chaining.
    x = jnp.transpose(x_nchw, (0, 2, 3, 1)).astype(jnp.bfloat16)   # NCHW -> NHWC
    n, h, w, c_in = x.shape
    ho = (h - 1) // stride + 1
    wo = (w - 1) // stride + 1
    th = _choose_row_tile(n, ho, wo)

    xp = jnp.pad(x, ((0, 0), (1, 1), (1, 1), (0, 0)))
    if stride == 1:
        x_imgs = [xp]
    else:
        # Phase decomposition: every in-kernel tap read becomes a contiguous slice.
        x_imgs = [xp[:, py::2, px::2, :] for py in (0, 1) for px in (0, 1)]

    # conv1 (3x3, stride) + bn1 + relu          [fused Pallas kernel 1]
    h1 = _fused_conv(x_imgs, kp["w1"], kp["b1"], ho=ho, wo=wo, th=th,
                     stride=stride, relu=True)

    # conv2 (3x3) + bn2 + shortcut + relu       [fused Pallas kernel 2]
    h1p = jnp.pad(h1, ((0, 0), (1, 1), (1, 1), (0, 0)))
    if kp["proj"]:
        xs = x[:, ::stride, ::stride, :]        # 1x1/stride-s sampling of x
        out = _fused_conv([h1p], kp["w2"], kp["b2"], ho=ho, wo=wo, th=th,
                          stride=1, relu=True, res=xs, res_mode="project",
                          wd=kp["wd"])
    else:
        res = _pad_axis(x, 3, kp["co_p"])       # no-op when c_out % 128 == 0
        out = _fused_conv([h1p], kp["w2"], kp["b2"], ho=ho, wo=wo, th=th,
                          stride=1, relu=True, res=res, res_mode="identity")

    out = out[..., :kp["c_out"]]                # drop lane padding
    return jnp.transpose(out, (0, 3, 1, 2)).astype(jnp.float32)   # back to NCHW


# ----------------------------- pure-JAX reference --------------------------- #

def basic_block_reference(raw, x_nchw, stride, eps=1e-5):
    def bn(x, p):
        scale = p["gamma"] / jnp.sqrt(p["var"] + eps)
        bias = p["beta"] - p["mean"] * scale
        return x * scale.reshape(1, -1, 1, 1) + bias.reshape(1, -1, 1, 1)

    def conv(x, w, s, pad):
        return lax.conv_general_dilated(
            x, w, (s, s), ((pad, pad), (pad, pad)),
            dimension_numbers=("NCHW", "OIHW", "NCHW"),
            precision=lax.Precision.HIGHEST)

    out = jnp.maximum(bn(conv(x_nchw, raw["conv1_w"], stride, 1), raw["bn1"]), 0.0)
    out = bn(conv(out, raw["conv2_w"], 1, 1), raw["bn2"])
    if "down_w" in raw:
        idn = bn(conv(x_nchw, raw["down_w"], stride, 0), raw["bn_d"])
    else:
        idn = x_nchw
    return jnp.maximum(out + idn, 0.0)


# ----------------------------- demo ----------------------------------------- #

if __name__ == "__main__":
    root = jax.random.PRNGKey(0)
    kx, kp_key, kx2, kp2_key = jax.random.split(root, 4)

    # bf16 activations/weights with f32 MXU accumulation -> loose tolerance.
    RTOL, ATOL = 5e-2, 5e-2

    # Config A: strided block with projection shortcut (c_in != c_out, stride 2)
    n, c_in, h, w = 2, 8, 16, 16
    c_out, stride = 16, 2
    x = jax.random.normal(kx, (n, c_in, h, w), jnp.float32)
    raw = init_basic_block(kp_key, c_in, c_out, stride)
    kparams = prepare_params(raw)
    fwd = jax.jit(lambda xx: basic_block_forward(kparams, xx, stride))
    out = jax.block_until_ready(fwd(x))
    ref = basic_block_reference(raw, x, stride)
    np.testing.assert_allclose(np.asarray(out), np.asarray(ref), rtol=RTOL, atol=ATOL)

    # Config B: identity shortcut (c_in == c_out, stride 1)
    n2, c2, h2, w2 = 2, 8, 8, 8
    x2 = jax.random.normal(kx2, (n2, c2, h2, w2), jnp.float32)
    raw2 = init_basic_block(kp2_key, c2, c2, 1)
    kparams2 = prepare_params(raw2)
    fwd2 = jax.jit(lambda xx: basic_block_forward(kparams2, xx, 1))
    out2 = jax.block_until_ready(fwd2(x2))
    ref2 = basic_block_reference(raw2, x2, 1)
    np.testing.assert_allclose(np.asarray(out2), np.asarray(ref2), rtol=RTOL, atol=ATOL)

    print("KERNEL_OK")
</pallas_src>

<mosaic_0001>
module attributes {stable_mosaic.version = 11 : i64} {
  func.func @kernel(%arg0: i32, %arg1: i32, %arg2: memref<1x9x9x8xbf16, #tpu.memory_space<vmem>>, %arg3: memref<1x9x9x8xbf16, #tpu.memory_space<vmem>>, %arg4: memref<1x9x9x8xbf16, #tpu.memory_space<vmem>>, %arg5: memref<1x9x9x8xbf16, #tpu.memory_space<vmem>>, %arg6: memref<9x8x128xbf16, #tpu.memory_space<vmem>>, %arg7: memref<1x128xf32, #tpu.memory_space<vmem>>, %arg8: memref<1x2x8x128xbf16, #tpu.memory_space<vmem>>) attributes {dimension_semantics = [#tpu.dimension_semantics<parallel>, #tpu.dimension_semantics<parallel>], iteration_bounds = array<i64: 2, 4>, scalar_prefetch = 0 : i64, scratch_operands = 0 : i64, tpu.core_type = #tpu.core_type<tc>, window_params = [{transform_indices = @transform_0, window_bounds = array<i64: 1, 9, 9, 8>}, {transform_indices = @transform_1, window_bounds = array<i64: 1, 9, 9, 8>}, {transform_indices = @transform_2, window_bounds = array<i64: 1, 9, 9, 8>}, {transform_indices = @transform_3, window_bounds = array<i64: 1, 9, 9, 8>}, {pipeline_mode = #tpu.pipeline_mode<synchronous>, transform_indices = @transform_4, window_bounds = array<i64: 9, 8, 128>}, {pipeline_mode = #tpu.pipeline_mode<synchronous>, transform_indices = @transform_5, window_bounds = array<i64: 1, 128>}, {transform_indices = @transform_6, window_bounds = array<i64: 1, 2, 8, 128>}]} {
    %c2_i32 = arith.constant 2 : i32
    %0 = arith.muli %arg1, %c2_i32 : i32
    %c0_i32 = arith.constant 0 : i32
    %1 = arith.addi %0, %c0_i32 : i32
    %c0 = arith.constant 0 : index
    %2 = arith.index_cast %1 : i32 to index
    %c0_0 = arith.constant 0 : index
    %c0_1 = arith.constant 0 : index
    %3 = vector.load %arg2[%c0, %2, %c0_0, %c0_1] : memref<1x9x9x8xbf16, #tpu.memory_space<vmem>>, vector<1x2x8x8xbf16>
    %4 = vector.shape_cast %3 : vector<1x2x8x8xbf16> to vector<2x8x8xbf16>
    %5 = vector.shape_cast %4 : vector<2x8x8xbf16> to vector<16x8xbf16>
    %c0_2 = arith.constant 0 : index
    %c0_3 = arith.constant 0 : index
    %c0_4 = arith.constant 0 : index
    %6 = vector.load %arg6[%c0_2, %c0_3, %c0_4] : memref<9x8x128xbf16, #tpu.memory_space<vmem>>, vector<1x8x128xbf16>
    %7 = vector.shape_cast %6 : vector<1x8x128xbf16> to vector<8x128xbf16>
    %cst = arith.constant dense<0.000000e+00> : vector<16x128xf32>
    %8 = tpu.matmul %5, %7, %cst {dimension_numbers = #tpu.dot_dimension_numbers<[1], [0], [0], [1], [0, 0, 1, 1], [], []>} : vector<16x8xbf16>, vector<8x128xbf16>, vector<16x128xf32> -> vector<16x128xf32>
    %c0_i32_5 = arith.constant 0 : i32
    %9 = arith.addi %0, %c0_i32_5 : i32
    %c0_6 = arith.constant 0 : index
    %10 = arith.index_cast %9 : i32 to index
    %c0_7 = arith.constant 0 : index
    %c0_8 = arith.constant 0 : index
    %11 = vector.load %arg3[%c0_6, %10, %c0_7, %c0_8] : memref<1x9x9x8xbf16, #tpu.memory_space<vmem>>, vector<1x2x8x8xbf16>
    %12 = vector.shape_cast %11 : vector<1x2x8x8xbf16> to vector<2x8x8xbf16>
    %13 = vector.shape_cast %12 : vector<2x8x8xbf16> to vector<16x8xbf16>
    %c1 = arith.constant 1 : index
    %c0_9 = arith.constant 0 : index
    %c0_10 = arith.constant 0 : index
    %14 = vector.load %arg6[%c1, %c0_9, %c0_10] : memref<9x8x128xbf16, #tpu.memory_space<vmem>>, vector<1x8x128xbf16>
    %15 = vector.shape_cast %14 : vector<1x8x128xbf16> to vector<8x128xbf16>
    %cst_11 = arith.constant dense<0.000000e+00> : vector<16x128xf32>
    %16 = tpu.matmul %13, %15, %cst_11 {dimension_numbers = #tpu.dot_dimension_numbers<[1], [0], [0], [1], [0, 0, 1, 1], [], []>} : vector<16x8xbf16>, vector<8x128xbf16>, vector<16x128xf32> -> vector<16x128xf32>
    %17 = arith.addf %8, %16 : vector<16x128xf32>
    %c0_i32_12 = arith.constant 0 : i32
    %18 = arith.addi %0, %c0_i32_12 : i32
    %c0_13 = arith.constant 0 : index
    %19 = arith.index_cast %18 : i32 to index
    %c1_14 = arith.constant 1 : index
    %c0_15 = arith.constant 0 : index
    %20 = vector.load %arg2[%c0_13, %19, %c1_14, %c0_15] : memref<1x9x9x8xbf16, #tpu.memory_space<vmem>>, vector<1x2x8x8xbf16>
    %21 = vector.shape_cast %20 : vector<1x2x8x8xbf16> to vector<2x8x8xbf16>
    %22 = vector.shape_cast %21 : vector<2x8x8xbf16> to vector<16x8xbf16>
    %c2 = arith.constant 2 : index
    %c0_16 = arith.constant 0 : index
    %c0_17 = arith.constant 0 : index
    %23 = vector.load %arg6[%c2, %c0_16, %c0_17] : memref<9x8x128xbf16, #tpu.memory_space<vmem>>, vector<1x8x128xbf16>
    %24 = vector.shape_cast %23 : vector<1x8x128xbf16> to vector<8x128xbf16>
    %cst_18 = arith.constant dense<0.000000e+00> : vector<16x128xf32>
    %25 = tpu.matmul %22, %24, %cst_18 {dimension_numbers = #tpu.dot_dimension_numbers<[1], [0], [0], [1], [0, 0, 1, 1], [], []>} : vector<16x8xbf16>, vector<8x128xbf16>, vector<16x128xf32> -> vector<16x128xf32>
    %26 = arith.addf %17, %25 : vector<16x128xf32>
    %c0_i32_19 = arith.constant 0 : i32
    %27 = arith.addi %0, %c0_i32_19 : i32
    %c0_20 = arith.constant 0 : index
    %28 = arith.index_cast %27 : i32 to index
    %c0_21 = arith.constant 0 : index
    %c0_22 = arith.constant 0 : index
    %29 = vector.load %arg4[%c0_20, %28, %c0_21, %c0_22] : memref<1x9x9x8xbf16, #tpu.memory_space<vmem>>, vector<1x2x8x8xbf16>
    %30 = vector.shape_cast %29 : vector<1x2x8x8xbf16> to vector<2x8x8xbf16>
    %31 = vector.shape_cast %30 : vector<2x8x8xbf16> to vector<16x8xbf16>
    %c3 = arith.constant 3 : index
    %c0_23 = arith.constant 0 : index
    %c0_24 = arith.constant 0 : index
    %32 = vector.load %arg6[%c3, %c0_23, %c0_24] : memref<9x8x128xbf16, #tpu.memory_space<vmem>>, vector<1x8x128xbf16>
    %33 = vector.shape_cast %32 : vector<1x8x128xbf16> to vector<8x128xbf16>
    %cst_25 = arith.constant dense<0.000000e+00> : vector<16x128xf32>
    %34 = tpu.matmul %31, %33, %cst_25 {dimension_numbers = #tpu.dot_dimension_numbers<[1], [0], [0], [1], [0, 0, 1, 1], [], []>} : vector<16x8xbf16>, vector<8x128xbf16>, vector<16x128xf32> -> vector<16x128xf32>
    %35 = arith.addf %26, %34 : vector<16x128xf32>
    %c0_i32_26 = arith.constant 0 : i32
    %36 = arith.addi %0, %c0_i32_26 : i32
    %c0_27 = arith.constant 0 : index
    %37 = arith.index_cast %36 : i32 to index
    %c0_28 = arith.constant 0 : index
    %c0_29 = arith.constant 0 : index
    %38 = vector.load %arg5[%c0_27, %37, %c0_28, %c0_29] : memref<1x9x9x8xbf16, #tpu.memory_space<vmem>>, vector<1x2x8x8xbf16>
    %39 = vector.shape_cast %38 : vector<1x2x8x8xbf16> to vector<2x8x8xbf16>
    %40 = vector.shape_cast %39 : vector<2x8x8xbf16> to vector<16x8xbf16>
    %c4 = arith.constant 4 : index
    %c0_30 = arith.constant 0 : index
    %c0_31 = arith.constant 0 : index
    %41 = vector.load %arg6[%c4, %c0_30, %c0_31] : memref<9x8x128xbf16, #tpu.memory_space<vmem>>, vector<1x8x128xbf16>
    %42 = vector.shape_cast %41 : vector<1x8x128xbf16> to vector<8x128xbf16>
    %cst_32 = arith.constant dense<0.000000e+00> : vector<16x128xf32>
    %43 = tpu.matmul %40, %42, %cst_32 {dimension_numbers = #tpu.dot_dimension_numbers<[1], [0], [0], [1], [0, 0, 1, 1], [], []>} : vector<16x8xbf16>, vector<8x128xbf16>, vector<16x128xf32> -> vector<16x128xf32>
    %44 = arith.addf %35, %43 : vector<16x128xf32>
    %c0_i32_33 = arith.constant 0 : i32
    %45 = arith.addi %0, %c0_i32_33 : i32
    %c0_34 = arith.constant 0 : index
    %46 = arith.index_cast %45 : i32 to index
    %c1_35 = arith.constant 1 : index
    %c0_36 = arith.constant 0 : index
    %47 = vector.load %arg4[%c0_34, %46, %c1_35, %c0_36] : memref<1x9x9x8xbf16, #tpu.memory_space<vmem>>, vector<1x2x8x8xbf16>
    %48 = vector.shape_cast %47 : vector<1x2x8x8xbf16> to vector<2x8x8xbf16>
    %49 = vector.shape_cast %48 : vector<2x8x8xbf16> to vector<16x8xbf16>
    %c5 = arith.constant 5 : index
    %c0_37 = arith.constant 0 : index
    %c0_38 = arith.constant 0 : index
    %50 = vector.load %arg6[%c5, %c0_37, %c0_38] : memref<9x8x128xbf16, #tpu.memory_space<vmem>>, vector<1x8x128xbf16>
    %51 = vector.shape_cast %50 : vector<1x8x128xbf16> to vector<8x128xbf16>
    %cst_39 = arith.constant dense<0.000000e+00> : vector<16x128xf32>
    %52 = tpu.matmul %49, %51, %cst_39 {dimension_numbers = #tpu.dot_dimension_numbers<[1], [0], [0], [1], [0, 0, 1, 1], [], []>} : vector<16x8xbf16>, vector<8x128xbf16>, vector<16x128xf32> -> vector<16x128xf32>
    %53 = arith.addf %44, %52 : vector<16x128xf32>
    %c1_i32 = arith.constant 1 : i32
    %54 = arith.addi %0, %c1_i32 : i32
    %c0_40 = arith.constant 0 : index
    %55 = arith.index_cast %54 : i32 to index
    %c0_41 = arith.constant 0 : index
    %c0_42 = arith.constant 0 : index
    %56 = vector.load %arg2[%c0_40, %55, %c0_41, %c0_42] : memref<1x9x9x8xbf16, #tpu.memory_space<vmem>>, vector<1x2x8x8xbf16>
    %57 = vector.shape_cast %56 : vector<1x2x8x8xbf16> to vector<2x8x8xbf16>
    %58 = vector.shape_cast %57 : vector<2x8x8xbf16> to vector<16x8xbf16>
    %c6 = arith.constant 6 : index
    %c0_43 = arith.constant 0 : index
    %c0_44 = arith.constant 0 : index
    %59 = vector.load %arg6[%c6, %c0_43, %c0_44] : memref<9x8x128xbf16, #tpu.memory_space<vmem>>, vector<1x8x128xbf16>
    %60 = vector.shape_cast %59 : vector<1x8x128xbf16> to vector<8x128xbf16>
    %cst_45 = arith.constant dense<0.000000e+00> : vector<16x128xf32>
    %61 = tpu.matmul %58, %60, %cst_45 {dimension_numbers = #tpu.dot_dimension_numbers<[1], [0], [0], [1], [0, 0, 1, 1], [], []>} : vector<16x8xbf16>, vector<8x128xbf16>, vector<16x128xf32> -> vector<16x128xf32>
    %62 = arith.addf %53, %61 : vector<16x128xf32>
    %c1_i32_46 = arith.constant 1 : i32
    %63 = arith.addi %0, %c1_i32_46 : i32
    %c0_47 = arith.constant 0 : index
    %64 = arith.index_cast %63 : i32 to index
    %c0_48 = arith.constant 0 : index
    %c0_49 = arith.constant 0 : index
    %65 = vector.load %arg3[%c0_47, %64, %c0_48, %c0_49] : memref<1x9x9x8xbf16, #tpu.memory_space<vmem>>, vector<1x2x8x8xbf16>
    %66 = vector.shape_cast %65 : vector<1x2x8x8xbf16> to vector<2x8x8xbf16>
    %67 = vector.shape_cast %66 : vector<2x8x8xbf16> to vector<16x8xbf16>
    %c7 = arith.constant 7 : index
    %c0_50 = arith.constant 0 : index
    %c0_51 = arith.constant 0 : index
    %68 = vector.load %arg6[%c7, %c0_50, %c0_51] : memref<9x8x128xbf16, #tpu.memory_space<vmem>>, vector<1x8x128xbf16>
    %69 = vector.shape_cast %68 : vector<1x8x128xbf16> to vector<8x128xbf16>
    %cst_52 = arith.constant dense<0.000000e+00> : vector<16x128xf32>
    %70 = tpu.matmul %67, %69, %cst_52 {dimension_numbers = #tpu.dot_dimension_numbers<[1], [0], [0], [1], [0, 0, 1, 1], [], []>} : vector<16x8xbf16>, vector<8x128xbf16>, vector<16x128xf32> -> vector<16x128xf32>
    %71 = arith.addf %62, %70 : vector<16x128xf32>
    %c1_i32_53 = arith.constant 1 : i32
    %72 = arith.addi %0, %c1_i32_53 : i32
    %c0_54 = arith.constant 0 : index
    %73 = arith.index_cast %72 : i32 to index
    %c1_55 = arith.constant 1 : index
    %c0_56 = arith.constant 0 : index
    %74 = vector.load %arg2[%c0_54, %73, %c1_55, %c0_56] : memref<1x9x9x8xbf16, #tpu.memory_space<vmem>>, vector<1x2x8x8xbf16>
    %75 = vector.shape_cast %74 : vector<1x2x8x8xbf16> to vector<2x8x8xbf16>
    %76 = vector.shape_cast %75 : vector<2x8x8xbf16> to vector<16x8xbf16>
    %c8 = arith.constant 8 : index
    %c0_57 = arith.constant 0 : index
    %c0_58 = arith.constant 0 : index
    %77 = vector.load %arg6[%c8, %c0_57, %c0_58] : memref<9x8x128xbf16, #tpu.memory_space<vmem>>, vector<1x8x128xbf16>
    %78 = vector.shape_cast %77 : vector<1x8x128xbf16> to vector<8x128xbf16>
    %cst_59 = arith.constant dense<0.000000e+00> : vector<16x128xf32>
    %79 = tpu.matmul %76, %78, %cst_59 {dimension_numbers = #tpu.dot_dimension_numbers<[1], [0], [0], [1], [0, 0, 1, 1], [], []>} : vector<16x8xbf16>, vector<8x128xbf16>, vector<16x128xf32> -> vector<16x128xf32>
    %80 = arith.addf %71, %79 : vector<16x128xf32>
    %c0_60 = arith.constant 0 : index
    %c0_61 = arith.constant 0 : index
    %81 = vector.load %arg7[%c0_60, %c0_61] : memref<1x128xf32, #tpu.memory_space<vmem>>, vector<1x128xf32>
    %82 = vector.broadcast %81 : vector<1x128xf32> to vector<16x128xf32>
    %83 = arith.addf %80, %82 : vector<16x128xf32>
    %cst_62 = arith.constant 0.000000e+00 : f32
    %84 = vector.broadcast %cst_62 : f32 to vector<16x128xf32>
    %85 = arith.maximumf %83, %84 : vector<16x128xf32>
    %86 = vector.shape_cast %85 : vector<16x128xf32> to vector<2x8x128xf32>
    %87 = arith.truncf %86 : vector<2x8x128xf32> to vector<2x8x128xbf16>
    %c0_63 = arith.constant 0 : index
    %c0_64 = arith.constant 0 : index
    %c0_65 = arith.constant 0 : index
    %c0_66 = arith.constant 0 : index
    %88 = vector.load %arg8[%c0_63, %c0_64, %c0_65, %c0_66] : memref<1x2x8x128xbf16, #tpu.memory_space<vmem>>, vector<1x2x8x128xbf16>
    %89 = vector.shape_cast %88 : vector<1x2x8x128xbf16> to vector<2x8x128xbf16>
    %90 = vector.shape_cast %87 : vector<2x8x128xbf16> to vector<1x2x8x128xbf16>
    tpu.vector_store %arg8[%c0_63, %c0_64, %c0_65, %c0_66], %90 {strides = array<i32>} : memref<1x2x8x128xbf16, #tpu.memory_space<vmem>>, vector<1x2x8x128xbf16>,
    return
  }
  func.func @transform_0(%arg0: i32, %arg1: i32) -> (i32, i32, i32, i32) {
    %c0_i32 = arith.constant 0 : i32
    %c0_i32_0 = arith.constant 0 : i32
    %c0_i32_1 = arith.constant 0 : i32
    %c0_i32_2 = arith.constant 0 : i32
    return %arg0, %c0_i32, %c0_i32_0, %c0_i32_1 : i32, i32, i32, i32
  }
  func.func @transform_1(%arg0: i32, %arg1: i32) -> (i32, i32, i32, i32) {
    %c0_i32 = arith.constant 0 : i32
    %c0_i32_0 = arith.constant 0 : i32
    %c0_i32_1 = arith.constant 0 : i32
    %c0_i32_2 = arith.constant 0 : i32
    return %arg0, %c0_i32, %c0_i32_0, %c0_i32_1 : i32, i32, i32, i32
  }
  func.func @transform_2(%arg0: i32, %arg1: i32) -> (i32, i32, i32, i32) {
    %c0_i32 = arith.constant 0 : i32
    %c0_i32_0 = arith.constant 0 : i32
    %c0_i32_1 = arith.constant 0 : i32
    %c0_i32_2 = arith.constant 0 : i32
    return %arg0, %c0_i32, %c0_i32_0, %c0_i32_1 : i32, i32, i32, i32
  }
  func.func @transform_3(%arg0: i32, %arg1: i32) -> (i32, i32, i32, i32) {
    %c0_i32 = arith.constant 0 : i32
    %c0_i32_0 = arith.constant 0 : i32
    %c0_i32_1 = arith.constant 0 : i32
    %c0_i32_2 = arith.constant 0 : i32
    return %arg0, %c0_i32, %c0_i32_0, %c0_i32_1 : i32, i32, i32, i32
  }
  func.func @transform_4(%arg0: i32, %arg1: i32) -> (i32, i32, i32) {
    %c0_i32 = arith.constant 0 : i32
    %c0_i32_0 = arith.constant 0 : i32
    %c0_i32_1 = arith.constant 0 : i32
    %c0_i32_2 = arith.constant 0 : i32
    return %c0_i32, %c0_i32_0, %c0_i32_1 : i32, i32, i32
  }
  func.func @transform_5(%arg0: i32, %arg1: i32) -> (i32, i32) {
    %c0_i32 = arith.constant 0 : i32
    %c0_i32_0 = arith.constant 0 : i32
    %c0_i32_1 = arith.constant 0 : i32
    return %c0_i32, %c0_i32_0 : i32, i32
  }
  func.func @transform_6(%arg0: i32, %arg1: i32) -> (i32, i32, i32, i32) {
    %c0_i32 = arith.constant 0 : i32
    %c0_i32_0 = arith.constant 0 : i32
    %c0_i32_1 = arith.constant 0 : i32
    return %arg0, %arg1, %c0_i32, %c0_i32_0 : i32, i32, i32, i32
  }
}

module attributes {stable_mosaic.version = 11 : i64} {
  func.func @kernel(%arg0: i32, %arg1: i32, %arg2: memref<1x10x10x128xbf16, #tpu.memory_space<vmem>>, %arg3: memref<1x2x8x8xbf16, #tpu.memory_space<vmem>>, %arg4: memref<9x128x128xbf16, #tpu.memory_space<vmem>>, %arg5: memref<8x128xbf16, #tpu.memory_space<vmem>>, %arg6: memref<1x128xf32, #tpu.memory_space<vmem>>, %arg7: memref<1x2x8x128xbf16, #tpu.memory_space<vmem>>) attributes {dimension_semantics = [#tpu.dimension_semantics<parallel>, #tpu.dimension_semantics<parallel>], iteration_bounds = array<i64: 2, 4>, scalar_prefetch = 0 : i64, scratch_operands = 0 : i64, tpu.core_type = #tpu.core_type<tc>, window_params = [{transform_indices = @transform_0, window_bounds = array<i64: 1, 10, 10, 128>}, {transform_indices = @transform_1, window_bounds = array<i64: 1, 2, 8, 8>}, {pipeline_mode = #tpu.pipeline_mode<synchronous>, transform_indices = @transform_2, window_bounds = array<i64: 9, 128, 128>}, {pipeline_mode = #tpu.pipeline_mode<synchronous>, transform_indices = @transform_3, window_bounds = array<i64: 8, 128>}, {pipeline_mode = #tpu.pipeline_mode<synchronous>, transform_indices = @transform_4, window_bounds = array<i64: 1, 128>}, {transform_indices = @transform_5, window_bounds = array<i64: 1, 2, 8, 128>}]} {
    %c2_i32 = arith.constant 2 : i32
    %0 = arith.muli %arg1, %c2_i32 : i32
    %c0_i32 = arith.constant 0 : i32
    %1 = arith.addi %0, %c0_i32 : i32
    %c0 = arith.constant 0 : index
    %2 = arith.index_cast %1 : i32 to index
    %c0_0 = arith.constant 0 : index
    %c0_1 = arith.constant 0 : index
    %3 = vector.load %arg2[%c0, %2, %c0_0, %c0_1] : memref<1x10x10x128xbf16, #tpu.memory_space<vmem>>, vector<1x2x8x128xbf16>
    %4 = vector.shape_cast %3 : vector<1x2x8x128xbf16> to vector<2x8x128xbf16>
    %5 = vector.shape_cast %4 : vector<2x8x128xbf16> to vector<16x128xbf16>
    %c0_2 = arith.constant 0 : index
    %c0_3 = arith.constant 0 : index
    %c0_4 = arith.constant 0 : index
    %6 = vector.load %arg4[%c0_2, %c0_3, %c0_4] : memref<9x128x128xbf16, #tpu.memory_space<vmem>>, vector<1x128x128xbf16>
    %7 = vector.shape_cast %6 : vector<1x128x128xbf16> to vector<128x128xbf16>
    %cst = arith.constant dense<0.000000e+00> : vector<16x128xf32>
    %8 = tpu.matmul %5, %7, %cst {dimension_numbers = #tpu.dot_dimension_numbers<[1], [0], [0], [1], [0, 0, 1, 1], [], []>} : vector<16x128xbf16>, vector<128x128xbf16>, vector<16x128xf32> -> vector<16x128xf32>
    %c0_i32_5 = arith.constant 0 : i32
    %9 = arith.addi %0, %c0_i32_5 : i32
    %c0_6 = arith.constant 0 : index
    %10 = arith.index_cast %9 : i32 to index
    %c1 = arith.constant 1 : index
    %c0_7 = arith.constant 0 : index
    %11 = vector.load %arg2[%c0_6, %10, %c1, %c0_7] : memref<1x10x10x128xbf16, #tpu.memory_space<vmem>>, vector<1x2x8x128xbf16>
    %12 = vector.shape_cast %11 : vector<1x2x8x128xbf16> to vector<2x8x128xbf16>
    %13 = vector.shape_cast %12 : vector<2x8x128xbf16> to vector<16x128xbf16>
    %c1_8 = arith.constant 1 : index
    %c0_9 = arith.constant 0 : index
    %c0_10 = arith.constant 0 : index
    %14 = vector.load %arg4[%c1_8, %c0_9, %c0_10] : memref<9x128x128xbf16, #tpu.memory_space<vmem>>, vector<1x128x128xbf16>
    %15 = vector.shape_cast %14 : vector<1x128x128xbf16> to vector<128x128xbf16>
    %cst_11 = arith.constant dense<0.000000e+00> : vector<16x128xf32>
    %16 = tpu.matmul %13, %15, %cst_11 {dimension_numbers = #tpu.dot_dimension_numbers<[1], [0], [0], [1], [0, 0, 1, 1], [], []>} : vector<16x128xbf16>, vector<128x128xbf16>, vector<16x128xf32> -> vector<16x128xf32>
    %17 = arith.addf %8, %16 : vector<16x128xf32>
    %c0_i32_12 = arith.constant 0 : i32
    %18 = arith.addi %0, %c0_i32_12 : i32
    %c0_13 = arith.constant 0 : index
    %19 = arith.index_cast %18 : i32 to index
    %c2 = arith.constant 2 : index
    %c0_14 = arith.constant 0 : index
    %20 = vector.load %arg2[%c0_13, %19, %c2, %c0_14] : memref<1x10x10x128xbf16, #tpu.memory_space<vmem>>, vector<1x2x8x128xbf16>
    %21 = vector.shape_cast %20 : vector<1x2x8x128xbf16> to vector<2x8x128xbf16>
    %22 = vector.shape_cast %21 : vector<2x8x128xbf16> to vector<16x128xbf16>
    %c2_15 = arith.constant 2 : index
    %c0_16 = arith.constant 0 : index
    %c0_17 = arith.constant 0 : index
    %23 = vector.load %arg4[%c2_15, %c0_16, %c0_17] : memref<9x128x128xbf16, #tpu.memory_space<vmem>>, vector<1x128x128xbf16>
    %24 = vector.shape_cast %23 : vector<1x128x128xbf16> to vector<128x128xbf16>
    %cst_18 = arith.constant dense<0.000000e+00> : vector<16x128xf32>
    %25 = tpu.matmul %22, %24, %cst_18 {dimension_numbers = #tpu.dot_dimension_numbers<[1], [0], [0], [1], [0, 0, 1, 1], [], []>} : vector<16x128xbf16>, vector<128x128xbf16>, vector<16x128xf32> -> vector<16x128xf32>
    %26 = arith.addf %17, %25 : vector<16x128xf32>
    %c1_i32 = arith.constant 1 : i32
    %27 = arith.addi %0, %c1_i32 : i32
    %c0_19 = arith.constant 0 : index
    %28 = arith.index_cast %27 : i32 to index
    %c0_20 = arith.constant 0 : index
    %c0_21 = arith.constant 0 : index
    %29 = vector.load %arg2[%c0_19, %28, %c0_20, %c0_21] : memref<1x10x10x128xbf16, #tpu.memory_space<vmem>>, vector<1x2x8x128xbf16>
    %30 = vector.shape_cast %29 : vector<1x2x8x128xbf16> to vector<2x8x128xbf16>
    %31 = vector.shape_cast %30 : vector<2x8x128xbf16> to vector<16x128xbf16>
    %c3 = arith.constant 3 : index
    %c0_22 = arith.constant 0 : index
    %c0_23 = arith.constant 0 : index
    %32 = vector.load %arg4[%c3, %c0_22, %c0_23] : memref<9x128x128xbf16, #tpu.memory_space<vmem>>, vector<1x128x128xbf16>
    %33 = vector.shape_cast %32 : vector<1x128x128xbf16> to vector<128x128xbf16>
    %cst_24 = arith.constant dense<0.000000e+00> : vector<16x128xf32>
    %34 = tpu.matmul %31, %33, %cst_24 {dimension_numbers = #tpu.dot_dimension_numbers<[1], [0], [0], [1], [0, 0, 1, 1], [], []>} : vector<16x128xbf16>, vector<128x128xbf16>, vector<16x128xf32> -> vector<16x128xf32>
    %35 = arith.addf %26, %34 : vector<16x128xf32>
    %c1_i32_25 = arith.constant 1 : i32
    %36 = arith.addi %0, %c1_i32_25 : i32
    %c0_26 = arith.constant 0 : index
    %37 = arith.index_cast %36 : i32 to index
    %c1_27 = arith.constant 1 : index
    %c0_28 = arith.constant 0 : index
    %38 = vector.load %arg2[%c0_26, %37, %c1_27, %c0_28] : memref<1x10x10x128xbf16, #tpu.memory_space<vmem>>, vector<1x2x8x128xbf16>
    %39 = vector.shape_cast %38 : vector<1x2x8x128xbf16> to vector<2x8x128xbf16>
    %40 = vector.shape_cast %39 : vector<2x8x128xbf16> to vector<16x128xbf16>
    %c4 = arith.constant 4 : index
    %c0_29 = arith.constant 0 : index
    %c0_30 = arith.constant 0 : index
    %41 = vector.load %arg4[%c4, %c0_29, %c0_30] : memref<9x128x128xbf16, #tpu.memory_space<vmem>>, vector<1x128x128xbf16>
    %42 = vector.shape_cast %41 : vector<1x128x128xbf16> to vector<128x128xbf16>
    %cst_31 = arith.constant dense<0.000000e+00> : vector<16x128xf32>
    %43 = tpu.matmul %40, %42, %cst_31 {dimension_numbers = #tpu.dot_dimension_numbers<[1], [0], [0], [1], [0, 0, 1, 1], [], []>} : vector<16x128xbf16>, vector<128x128xbf16>, vector<16x128xf32> -> vector<16x128xf32>
    %44 = arith.addf %35, %43 : vector<16x128xf32>
    %c1_i32_32 = arith.constant 1 : i32
    %45 = arith.addi %0, %c1_i32_32 : i32
    %c0_33 = arith.constant 0 : index
    %46 = arith.index_cast %45 : i32 to index
    %c2_34 = arith.constant 2 : index
    %c0_35 = arith.constant 0 : index
    %47 = vector.load %arg2[%c0_33, %46, %c2_34, %c0_35] : memref<1x10x10x128xbf16, #tpu.memory_space<vmem>>, vector<1x2x8x128xbf16>
    %48 = vector.shape_cast %47 : vector<1x2x8x128xbf16> to vector<2x8x128xbf16>
    %49 = vector.shape_cast %48 : vector<2x8x128xbf16> to vector<16x128xbf16>
    %c5 = arith.constant 5 : index
    %c0_36 = arith.constant 0 : index
    %c0_37 = arith.constant 0 : index
    %50 = vector.load %arg4[%c5, %c0_36, %c0_37] : memref<9x128x128xbf16, #tpu.memory_space<vmem>>, vector<1x128x128xbf16>
    %51 = vector.shape_cast %50 : vector<1x128x128xbf16> to vector<128x128xbf16>
    %cst_38 = arith.constant dense<0.000000e+00> : vector<16x128xf32>
    %52 = tpu.matmul %49, %51, %cst_38 {dimension_numbers = #tpu.dot_dimension_numbers<[1], [0], [0], [1], [0, 0, 1, 1], [], []>} : vector<16x128xbf16>, vector<128x128xbf16>, vector<16x128xf32> -> vector<16x128xf32>
    %53 = arith.addf %44, %52 : vector<16x128xf32>
    %c2_i32_39 = arith.constant 2 : i32
    %54 = arith.addi %0, %c2_i32_39 : i32
    %c0_40 = arith.constant 0 : index
    %55 = arith.index_cast %54 : i32 to index
    %c0_41 = arith.constant 0 : index
    %c0_42 = arith.constant 0 : index
    %56 = vector.load %arg2[%c0_40, %55, %c0_41, %c0_42] : memref<1x10x10x128xbf16, #tpu.memory_space<vmem>>, vector<1x2x8x128xbf16>
    %57 = vector.shape_cast %56 : vector<1x2x8x128xbf16> to vector<2x8x128xbf16>
    %58 = vector.shape_cast %57 : vector<2x8x128xbf16> to vector<16x128xbf16>
    %c6 = arith.constant 6 : index
    %c0_43 = arith.constant 0 : index
    %c0_44 = arith.constant 0 : index
    %59 = vector.load %arg4[%c6, %c0_43, %c0_44] : memref<9x128x128xbf16, #tpu.memory_space<vmem>>, vector<1x128x128xbf16>
    %60 = vector.shape_cast %59 : vector<1x128x128xbf16> to vector<128x128xbf16>
    %cst_45 = arith.constant dense<0.000000e+00> : vector<16x128xf32>
    %61 = tpu.matmul %58, %60, %cst_45 {dimension_numbers = #tpu.dot_dimension_numbers<[1], [0], [0], [1], [0, 0, 1, 1], [], []>} : vector<16x128xbf16>, vector<128x128xbf16>, vector<16x128xf32> -> vector<16x128xf32>
    %62 = arith.addf %53, %61 : vector<16x128xf32>
    %c2_i32_46 = arith.constant 2 : i32
    %63 = arith.addi %0, %c2_i32_46 : i32
    %c0_47 = arith.constant 0 : index
    %64 = arith.index_cast %63 : i32 to index
    %c1_48 = arith.constant 1 : index
    %c0_49 = arith.constant 0 : index
    %65 = vector.load %arg2[%c0_47, %64, %c1_48, %c0_49] : memref<1x10x10x128xbf16, #tpu.memory_space<vmem>>, vector<1x2x8x128xbf16>
    %66 = vector.shape_cast %65 : vector<1x2x8x128xbf16> to vector<2x8x128xbf16>
    %67 = vector.shape_cast %66 : vector<2x8x128xbf16> to vector<16x128xbf16>
    %c7 = arith.constant 7 : index
    %c0_50 = arith.constant 0 : index
    %c0_51 = arith.constant 0 : index
    %68 = vector.load %arg4[%c7, %c0_50, %c0_51] : memref<9x128x128xbf16, #tpu.memory_space<vmem>>, vector<1x128x128xbf16>
    %69 = vector.shape_cast %68 : vector<1x128x128xbf16> to vector<128x128xbf16>
    %cst_52 = arith.constant dense<0.000000e+00> : vector<16x128xf32>
    %70 = tpu.matmul %67, %69, %cst_52 {dimension_numbers = #tpu.dot_dimension_numbers<[1], [0], [0], [1], [0, 0, 1, 1], [], []>} : vector<16x128xbf16>, vector<128x128xbf16>, vector<16x128xf32> -> vector<16x128xf32>
    %71 = arith.addf %62, %70 : vector<16x128xf32>
    %c2_i32_53 = arith.constant 2 : i32
    %72 = arith.addi %0, %c2_i32_53 : i32
    %c0_54 = arith.constant 0 : index
    %73 = arith.index_cast %72 : i32 to index
    %c2_55 = arith.constant 2 : index
    %c0_56 = arith.constant 0 : index
    %74 = vector.load %arg2[%c0_54, %73, %c2_55, %c0_56] : memref<1x10x10x128xbf16, #tpu.memory_space<vmem>>, vector<1x2x8x128xbf16>
    %75 = vector.shape_cast %74 : vector<1x2x8x128xbf16> to vector<2x8x128xbf16>
    %76 = vector.shape_cast %75 : vector<2x8x128xbf16> to vector<16x128xbf16>
    %c8 = arith.constant 8 : index
    %c0_57 = arith.constant 0 : index
    %c0_58 = arith.constant 0 : index
    %77 = vector.load %arg4[%c8, %c0_57, %c0_58] : memref<9x128x128xbf16, #tpu.memory_space<vmem>>, vector<1x128x128xbf16>
    %78 = vector.shape_cast %77 : vector<1x128x128xbf16> to vector<128x128xbf16>
    %cst_59 = arith.constant dense<0.000000e+00> : vector<16x128xf32>
    %79 = tpu.matmul %76, %78, %cst_59 {dimension_numbers = #tpu.dot_dimension_numbers<[1], [0], [0], [1], [0, 0, 1, 1], [], []>} : vector<16x128xbf16>, vector<128x128xbf16>, vector<16x128xf32> -> vector<16x128xf32>
    %80 = arith.addf %71, %79 : vector<16x128xf32>
    %c0_60 = arith.constant 0 : index
    %c0_61 = arith.constant 0 : index
    %c0_62 = arith.constant 0 : index
    %c0_63 = arith.constant 0 : index
    %81 = vector.load %arg3[%c0_60, %c0_61, %c0_62, %c0_63] : memref<1x2x8x8xbf16, #tpu.memory_space<vmem>>, vector<1x2x8x8xbf16>
    %82 = vector.shape_cast %81 : vector<1x2x8x8xbf16> to vector<2x8x8xbf16>
    %83 = vector.shape_cast %82 : vector<2x8x8xbf16> to vector<16x8xbf16>
    %c0_64 = arith.constant 0 : index
    %c0_65 = arith.constant 0 : index
    %84 = vector.load %arg5[%c0_64, %c0_65] : memref<8x128xbf16, #tpu.memory_space<vmem>>, vector<8x128xbf16>
    %cst_66 = arith.constant dense<0.000000e+00> : vector<16x128xf32>
    %85 = tpu.matmul %83, %84, %cst_66 {dimension_numbers = #tpu.dot_dimension_numbers<[1], [0], [0], [1], [0, 0, 1, 1], [], []>} : vector<16x8xbf16>, vector<8x128xbf16>, vector<16x128xf32> -> vector<16x128xf32>
    %86 = arith.addf %80, %85 : vector<16x128xf32>
    %c0_67 = arith.constant 0 : index
    %c0_68 = arith.constant 0 : index
    %87 = vector.load %arg6[%c0_67, %c0_68] : memref<1x128xf32, #tpu.memory_space<vmem>>, vector<1x128xf32>
    %88 = vector.broadcast %87 : vector<1x128xf32> to vector<16x128xf32>
    %89 = arith.addf %86, %88 : vector<16x128xf32>
    %cst_69 = arith.constant 0.000000e+00 : f32
    %90 = vector.broadcast %cst_69 : f32 to vector<16x128xf32>
    %91 = arith.maximumf %89, %90 : vector<16x128xf32>
    %92 = vector.shape_cast %91 : vector<16x128xf32> to vector<2x8x128xf32>
    %93 = arith.truncf %92 : vector<2x8x128xf32> to vector<2x8x128xbf16>
    %c0_70 = arith.constant 0 : index
    %c0_71 = arith.constant 0 : index
    %c0_72 = arith.constant 0 : index
    %c0_73 = arith.constant 0 : index
    %94 = vector.load %arg7[%c0_70, %c0_71, %c0_72, %c0_73] : memref<1x2x8x128xbf16, #tpu.memory_space<vmem>>, vector<1x2x8x128xbf16>
    %95 = vector.shape_cast %94 : vector<1x2x8x128xbf16> to vector<2x8x128xbf16>
    %96 = vector.shape_cast %93 : vector<2x8x128xbf16> to vector<1x2x8x128xbf16>
    tpu.vector_store %arg7[%c0_70, %c0_71, %c0_72, %c0_73], %96 {strides = array<i32>} : memref<1x2x8x128xbf16, #tpu.memory_space<vmem>>, vector<1x2x8x128xbf16>,
    return
  }
  func.func @transform_0(%arg0: i32, %arg1: i32) -> (i32, i32, i32, i32) {
    %c0_i32 = arith.constant 0 : i32
    %c0_i32_0 = arith.constant 0 : i32
    %c0_i32_1 = arith.constant 0 : i32
    %c0_i32_2 = arith.constant 0 : i32
    return %arg0, %c0_i32, %c0_i32_0, %c0_i32_1 : i32, i32, i32, i32
  }
  func.func @transform_1(%arg0: i32, %arg1: i32) -> (i32, i32, i32, i32) {
    %c0_i32 = arith.constant 0 : i32
    %c0_i32_0 = arith.constant 0 : i32
    %c0_i32_1 = arith.constant 0 : i32
    return %arg0, %arg1, %c0_i32, %c0_i32_0 : i32, i32, i32, i32
  }
  func.func @transform_2(%arg0: i32, %arg1: i32) -> (i32, i32, i32) {
    %c0_i32 = arith.constant 0 : i32
    %c0_i32_0 = arith.constant 0 : i32
    %c0_i32_1 = arith.constant 0 : i32
    %c0_i32_2 = arith.constant 0 : i32
    return %c0_i32, %c0_i32_0, %c0_i32_1 : i32, i32, i32
  }
  func.func @transform_3(%arg0: i32, %arg1: i32) -> (i32, i32) {
    %c0_i32 = arith.constant 0 : i32
    %c0_i32_0 = arith.constant 0 : i32
    %c0_i32_1 = arith.constant 0 : i32
    return %c0_i32, %c0_i32_0 : i32, i32
  }
  func.func @transform_4(%arg0: i32, %arg1: i32) -> (i32, i32) {
    %c0_i32 = arith.constant 0 : i32
    %c0_i32_0 = arith.constant 0 : i32
    %c0_i32_1 = arith.constant 0 : i32
    return %c0_i32, %c0_i32_0 : i32, i32
  }
  func.func @transform_5(%arg0: i32, %arg1: i32) -> (i32, i32, i32, i32) {
    %c0_i32 = arith.constant 0 : i32
    %c0_i32_0 = arith.constant 0 : i32
    %c0_i32_1 = arith.constant 0 : i32
    return %arg0, %arg1, %c0_i32, %c0_i32_0 : i32, i32, i32, i32
  }
}

</mosaic_0001>

<llo_original>
// kernel: _lambda_.2
$region0: #{_lambda_.2}
  #allocation0 [shape = 'u32[]', space=smem, size = 0x4, offset = 0x4, fixed_abs, tag = 'smem constant byte address 0x4 - core index']
  #allocation1 [shape = 'u32[72,128]{1,0:T(1,128)}', space=vmem, size = 0x9000, scoped, tag = 'internal scratch']
  %s0 = inlined_call_operand.vmem [shape: bf16[2,9,9,8], index: 0, kind: input, shape index: {}]
  %s1 = inlined_call_operand.vmem [shape: bf16[2,9,9,8], index: 1, kind: input, shape index: {}]
  %s2 = inlined_call_operand.vmem [shape: bf16[2,9,9,8], index: 2, kind: input, shape index: {}]
  %s3 = inlined_call_operand.vmem [shape: bf16[2,9,9,8], index: 3, kind: input, shape index: {}]
  %s4 = inlined_call_operand.vmem [shape: bf16[9,8,128], index: 4, kind: input, shape index: {}]
  %s5 = inlined_call_operand.vmem [shape: f32[1,128], index: 5, kind: input, shape index: {}]
  %s6 = inlined_call_operand.vmem [shape: bf16[2,8,8,128], index: 6, kind: output, shape index: {}]
  %s7 = sld [smem:[#allocation0]]
  $region57: #{_lambda_.2} parent=0
    _
  %s9 = ssub.s32 1, %s7
  %s10 = scalar_select 0, %s9, %s7
  loop: start=0, step=1, limit=10
  $region2: #{_lambda_.2} parent=0 // loop_pre_header
    _
  $region3: #{_lambda_.2} parent=0 // loop_header
    %s12 = sphi 0, %s16
    %p13 = scmp.ge.s32.totalorder %s12, 10
    %s19 = sphi 0, %s31
    %s20 = sphi 0, %s27
    %s21 = sphi 0, %s19
    %s22 = sphi 0, %s20
    %s23 = sphi 0, %s21
    %s24 = sphi 0, %s22
    %s34 = sphi 0, %s36
    %s37 = sphi 0, %s34
    %s38 = sphi 0, %s37
    %s54 = sphi 0, %s38
    %s60 = sphi 0, %s62
    %s63 = sphi 0, %s60
    %s64 = sphi 0, %s63
    %s80 = sphi 0, %s64
    %s86 = sphi 0, %s88
    %s89 = sphi 0, %s86
    %s90 = sphi 0, %s89
    %s106 = sphi 0, %s90
    %s112 = sphi 0, %s114
    %s115 = sphi 0, %s112
    %s116 = sphi 0, %s115
    %s132 = sphi 0, %s116
    %s136 = sphi 0, %s136
    %s138 = sphi 0, %s136
    %s139 = sphi 0, %s138
    %s153 = sphi 0, %s139
    %s157 = sphi 0, %s157
    %s159 = sphi 0, %s157
    %s160 = sphi 0, %s159
    %s174 = sphi 0, %s160
    %s182 = sphi 0, %s184
    %s185 = sphi 0, %s182
    %s186 = sphi 0, %s185
    %s202 = sphi 0, %s186
  $region4: #{_lambda_.2} parent=0 // loop_header_branch
    %15 = sbr.rel (%p13) target = $region8
  $region5: #{_lambda_.2} parent=0 // loop_body
    %s17 = ssub.s32 %s12, 1
    %s18 = ssub.s32 %s12, 2
    %s25 = sadd.s32 1, %s20
    %p26 = scmp.ge.s32.totalorder %s25, 4
    %s27 = scalar_select %p26, 0, %s25
    %s28 = sadd.s32 1, %s19
    %s29 = scalar_select %p26, %s28, %s19
    %p30 = scmp.ge.s32.totalorder %s29, 2
    %s31 = scalar_select %p30, 0, %s29
    %s32 = ssub.s32 %s19, %s31
    %p33 = scmp.eq.s32.totalorder %s32, 0
    %s35 = sadd.s32 %s34, 1
    %s36 = scalar_select %p33, %s34, %s35
    %p39 = pneg %p33
    %p40 = scmp.eq.s32.totalorder %s12, 7
    %p41 = por %p39, %p40
    %p42 = scmp.ne.s32.totalorder %s34, %s37
    %p43 = scmp.eq.s32.totalorder %s12, 0
    %p44 = por %p42, %p43
    %p45 = scmp.ne.s32.totalorder %s34, %s37
    %p46 = scmp.eq.s32.totalorder %s17, 7
    %p47 = por %p45, %p46
    %p48 = scmp.ne.s32.totalorder %s37, %s38
    %p49 = scmp.eq.s32.totalorder %s17, 0
    %p50 = por %p48, %p49
    %p51 = scmp.ne.s32.totalorder %s37, %s38
    %p52 = scmp.eq.s32.totalorder %s18, 7
    %p53 = por %p51, %p52
    %p55 = scmp.ne.s32.totalorder %s38, %s54
    %p56 = scmp.eq.s32.totalorder %s18, 0
    %p57 = por %p55, %p56
    %s58 = ssub.s32 %s19, %s31
    %p59 = scmp.eq.s32.totalorder %s58, 0
    %s61 = sadd.s32 %s60, 1
    %s62 = scalar_select %p59, %s60, %s61
    %p65 = pneg %p59
    %p66 = scmp.eq.s32.totalorder %s12, 7
    %p67 = por %p65, %p66
    %p68 = scmp.ne.s32.totalorder %s60, %s63
    %p69 = scmp.eq.s32.totalorder %s12, 0
    %p70 = por %p68, %p69
    %p71 = scmp.ne.s32.totalorder %s60, %s63
    %p72 = scmp.eq.s32.totalorder %s17, 7
    %p73 = por %p71, %p72
    %p74 = scmp.ne.s32.totalorder %s63, %s64
    %p75 = scmp.eq.s32.totalorder %s17, 0
    %p76 = por %p74, %p75
    %p77 = scmp.ne.s32.totalorder %s63, %s64
    %p78 = scmp.eq.s32.totalorder %s18, 7
    %p79 = por %p77, %p78
    %p81 = scmp.ne.s32.totalorder %s64, %s80
    %p82 = scmp.eq.s32.totalorder %s18, 0
    %p83 = por %p81, %p82
    %s84 = ssub.s32 %s19, %s31
    %p85 = scmp.eq.s32.totalorder %s84, 0
    %s87 = sadd.s32 %s86, 1
    %s88 = scalar_select %p85, %s86, %s87
    %p91 = pneg %p85
    %p92 = scmp.eq.s32.totalorder %s12, 7
    %p93 = por %p91, %p92
    %p94 = scmp.ne.s32.totalorder %s86, %s89
    %p95 = scmp.eq.s32.totalorder %s12, 0
    %p96 = por %p94, %p95
    %p97 = scmp.ne.s32.totalorder %s86, %s89
    %p98 = scmp.eq.s32.totalorder %s17, 7
    %p99 = por %p97, %p98
    %p100 = scmp.ne.s32.totalorder %s89, %s90
    %p101 = scmp.eq.s32.totalorder %s17, 0
    %p102 = por %p100, %p101
    %p103 = scmp.ne.s32.totalorder %s89, %s90
    %p104 = scmp.eq.s32.totalorder %s18, 7
    %p105 = por %p103, %p104
    %p107 = scmp.ne.s32.totalorder %s90, %s106
    %p108 = scmp.eq.s32.totalorder %s18, 0
    %p109 = por %p107, %p108
    %s110 = ssub.s32 %s19, %s31
    %p111 = scmp.eq.s32.totalorder %s110, 0
    %s113 = sadd.s32 %s112, 1
    %s114 = scalar_select %p111, %s112, %s113
    %p117 = pneg %p111
    %p118 = scmp.eq.s32.totalorder %s12, 7
    %p119 = por %p117, %p118
    %p120 = scmp.ne.s32.totalorder %s112, %s115
    %p121 = scmp.eq.s32.totalorder %s12, 0
    %p122 = por %p120, %p121
    %p123 = scmp.ne.s32.totalorder %s112, %s115
    %p124 = scmp.eq.s32.totalorder %s17, 7
    %p125 = por %p123, %p124
    %p126 = scmp.ne.s32.totalorder %s115, %s116
    %p127 = scmp.eq.s32.totalorder %s17, 0
    %p128 = por %p126, %p127
    %p129 = scmp.ne.s32.totalorder %s115, %s116
    %p130 = scmp.eq.s32.totalorder %s18, 7
    %p131 = por %p129, %p130
    %p133 = scmp.ne.s32.totalorder %s116, %s132
    %p134 = scmp.eq.s32.totalorder %s18, 0
    %p135 = por %p133, %p134
    %s137 = sadd.s32 %s136, 1
    %p140 = scmp.eq.s32.totalorder %s12, 7
    %p141 = scmp.ne.s32.totalorder %s136, %s138
    %p142 = scmp.eq.s32.totalorder %s12, 0
    %p143 = por %p141, %p142
    %p144 = scmp.ne.s32.totalorder %s136, %s138
    %p145 = scmp.eq.s32.totalorder %s17, 7
    %p146 = por %p144, %p145
    %p147 = scmp.ne.s32.totalorder %s138, %s139
    %p148 = scmp.eq.s32.totalorder %s17, 0
    %p149 = por %p147, %p148
    %p150 = scmp.ne.s32.totalorder %s138, %s139
    %p151 = scmp.eq.s32.totalorder %s18, 7
    %p152 = por %p150, %p151
    %p154 = scmp.ne.s32.totalorder %s139, %s153
    %p155 = scmp.eq.s32.totalorder %s18, 0
    %p156 = por %p154, %p155
    %s158 = sadd.s32 %s157, 1
    %p161 = scmp.eq.s32.totalorder %s12, 7
    %p162 = scmp.ne.s32.totalorder %s157, %s159
    %p163 = scmp.eq.s32.totalorder %s12, 0
    %p164 = por %p162, %p163
    %p165 = scmp.ne.s32.totalorder %s157, %s159
    %p166 = scmp.eq.s32.totalorder %s17, 7
    %p167 = por %p165, %p166
    %p168 = scmp.ne.s32.totalorder %s159, %s160
    %p169 = scmp.eq.s32.totalorder %s17, 0
    %p170 = por %p168, %p169
    %p171 = scmp.ne.s32.totalorder %s159, %s160
    %p172 = scmp.eq.s32.totalorder %s18, 7
    %p173 = por %p171, %p172
    %p175 = scmp.ne.s32.totalorder %s160, %s174
    %p176 = scmp.eq.s32.totalorder %s18, 0
    %p177 = por %p175, %p176
    %s178 = ssub.s32 %s19, %s31
    %s179 = ssub.s32 %s20, %s27
    %s180 = sor.u32 %s178, %s179
    %p181 = scmp.eq.s32.totalorder %s180, 0
    %s183 = sadd.s32 %s182, 1
    %s184 = scalar_select %p181, %s182, %s183
    %p187 = pneg %p181
    %p188 = scmp.eq.s32.totalorder %s12, 7
    %p189 = por %p187, %p188
    %p190 = scmp.ne.s32.totalorder %s182, %s185
    %p191 = scmp.eq.s32.totalorder %s12, 0
    %p192 = por %p190, %p191
    %p193 = scmp.ne.s32.totalorder %s182, %s185
    %p194 = scmp.eq.s32.totalorder %s17, 7
    %p195 = por %p193, %p194
    %p196 = scmp.ne.s32.totalorder %s185, %s186
    %p197 = scmp.eq.s32.totalorder %s17, 0
    %p198 = por %p196, %p197
    %p199 = scmp.ne.s32.totalorder %s185, %s186
    %p200 = scmp.eq.s32.totalorder %s18, 7
    %p201 = por %p199, %p200
    %p203 = scmp.ne.s32.totalorder %s186, %s202
    %p204 = scmp.eq.s32.totalorder %s18, 0
    %p205 = por %p203, %p204
    %p206 = scmp.le.s32.totalorder 1, %s12
    %p207 = scmp.lt.s32.totalorder %s12, 9
    %p208 = pnand %p206, %p207
    %p209 = pneg %p208
    // Predicated region
    $region9: #{_lambda_.2} parent=5 // pred_check
      _
    $region10: #{_lambda_.2} parent=5 // pred_check_branch
      %211 = sbr.rel (%p208) target = $region12
    $region11: #{_lambda_.2} parent=5 // pred_region
      %s212 = ssub.s32 %s12, 1
      // Predicated region
      $region13: #{_lambda_.2} parent=11 // pred_check
        %p213 = pneg %p149
      $region14: #{_lambda_.2} parent=11 // pred_check_branch
        %215 = sbr.rel (%p213) target = $region16
      $region15: #{_lambda_.2} parent=11 // pred_region
        _
      $region16: #{_lambda_.2} parent=11 // pred_fallthru
        _
      // Predicated region
      $region17: #{_lambda_.2} parent=11 // pred_check
        %p216 = pneg %p170
      $region18: #{_lambda_.2} parent=11 // pred_check_branch
        %218 = sbr.rel (%p216) target = $region20
      $region19: #{_lambda_.2} parent=11 // pred_region
        _
      $region20: #{_lambda_.2} parent=11 // pred_fallthru
        _
    $region12: #{_lambda_.2} parent=5 // pred_fallthru
      _
    %p219 = scmp.lt.s32.totalorder %s12, 8
    // Predicated region
    $region21: #{_lambda_.2} parent=5 // pred_check
      %p220 = pneg %p219
    $region22: #{_lambda_.2} parent=5 // pred_check_branch
      %222 = sbr.rel (%p220) target = $region24
    $region23: #{_lambda_.2} parent=5 // pred_region
      // Predicated region
      $region25: #{_lambda_.2} parent=23 // pred_check
        %p223 = pneg %p44
      $region26: #{_lambda_.2} parent=23 // pred_check_branch
        %225 = sbr.rel (%p223) target = $region28
      $region27: #{_lambda_.2} parent=23 // pred_region
        %p226 = scmp.lt.s32.totalorder %s19, 1
        %s227 = scalar_select %p226, %s19, 1
        %s228 = smul.addr %s227, 18
        %s229 = smul.addr %s228, 4
        %s230 = scalar_lea.vmem %s0, %s229
      $region28: #{_lambda_.2} parent=23 // pred_fallthru
        _
      // Predicated region
      $region29: #{_lambda_.2} parent=23 // pred_check
        %p231 = pneg %p70
      $region30: #{_lambda_.2} parent=23 // pred_check_branch
        %233 = sbr.rel (%p231) target = $region32
      $region31: #{_lambda_.2} parent=23 // pred_region
        %p234 = scmp.lt.s32.totalorder %s19, 1
        %s235 = scalar_select %p234, %s19, 1
        %s236 = smul.addr %s235, 18
        %s237 = smul.addr %s236, 4
        %s238 = scalar_lea.vmem %s1, %s237
      $region32: #{_lambda_.2} parent=23 // pred_fallthru
        _
      // Predicated region
      $region33: #{_lambda_.2} parent=23 // pred_check
        %p239 = pneg %p96
      $region34: #{_lambda_.2} parent=23 // pred_check_branch
        %241 = sbr.rel (%p239) target = $region36
      $region35: #{_lambda_.2} parent=23 // pred_region
        %p242 = scmp.lt.s32.totalorder %s19, 1
        %s243 = scalar_select %p242, %s19, 1
        %s244 = smul.addr %s243, 18
        %s245 = smul.addr %s244, 4
        %s246 = scalar_lea.vmem %s2, %s245
      $region36: #{_lambda_.2} parent=23 // pred_fallthru
        _
      // Predicated region
      $region37: #{_lambda_.2} parent=23 // pred_check
        %p247 = pneg %p122
      $region38: #{_lambda_.2} parent=23 // pred_check_branch
        %249 = sbr.rel (%p247) target = $region40
      $region39: #{_lambda_.2} parent=23 // pred_region
        %p250 = scmp.lt.s32.totalorder %s19, 1
        %s251 = scalar_select %p250, %s19, 1
        %s252 = smul.addr %s251, 18
        %s253 = smul.addr %s252, 4
        %s254 = scalar_lea.vmem %s3, %s253
      $region40: #{_lambda_.2} parent=23 // pred_fallthru
        _
    $region24: #{_lambda_.2} parent=5 // pred_fallthru
      _
    %p255 = scmp.le.s32.totalorder 1, %s12
    %p256 = scmp.lt.s32.totalorder %s12, 9
    %p257 = pnand %p255, %p256
    %p258 = pneg %p257
    // Predicated region
    $region41: #{_lambda_.2} parent=5 // pred_check
      _
    $region42: #{_lambda_.2} parent=5 // pred_check_branch
      %260 = sbr.rel (%p257) target = $region44
    $region43: #{_lambda_.2} parent=5 // pred_region
      %s261 = ssub.s32 %s12, 1
      %p262 = scmp.lt.s32.totalorder %s21, 1
      %s263 = scalar_select %p262, %s21, 1
      %s264 = smul.addr %s263, 18
      %s265 = smul.addr %s264, 4
      %s266 = scalar_lea.vmem %s0, %s265
      %p267 = pneg %p50
      %p268 = pneg %p47
      %p269 = scmp.lt.s32.totalorder %s21, 1
      %s270 = scalar_select %p269, %s21, 1
      %s271 = smul.addr %s270, 18
      %s272 = smul.addr %s271, 4
      %s273 = scalar_lea.vmem %s1, %s272
      %p274 = pneg %p76
      %p275 = pneg %p73
      %p276 = scmp.lt.s32.totalorder %s21, 1
      %s277 = scalar_select %p276, %s21, 1
      %s278 = smul.addr %s277, 18
      %s279 = smul.addr %s278, 4
      %s280 = scalar_lea.vmem %s2, %s279
      %p281 = pneg %p102
      %p282 = pneg %p99
      %p283 = scmp.lt.s32.totalorder %s21, 1
      %s284 = scalar_select %p283, %s21, 1
      %s285 = smul.addr %s284, 18
      %s286 = smul.addr %s285, 4
      %s287 = scalar_lea.vmem %s3, %s286
      %p288 = pneg %p128
      %p289 = pneg %p125
      %p290 = pneg %p149
      %p291 = pneg %p146
      %p292 = pneg %p170
      %p293 = pneg %p167
      %p294 = pneg %p198
      %p295 = pneg %p195
      %s296 = smul.u32 2, %s22
      %p297 = scmp.lt.s32.totalorder %s21, 1
      %s298 = scalar_select %p297, %s21, 1
      %p299 = scmp.lt.s32.totalorder %s296, 7
      %s300 = scalar_select %p299, %s296, 7
      %s301 = smul.addr %s298, 8
      %s302 = sadd.s32 %s300, %s301
      %s303 = smul.addr %s302, 4
      %s304 = scalar_lea.vmem %s6, %s303
      %p305 = scmp.lt.s32.totalorder %s21, 1
      %s306 = scalar_select %p305, %s21, 1
      %s307 = smul.addr %s306, 18
      %s308 = smul.addr %s307, 4
      %s309 = scalar_lea.vmem %s0, %s308
      %p310 = scmp.lt.s32.totalorder %s21, 1
      %s311 = scalar_select %p310, %s21, 1
      %s312 = smul.addr %s311, 18
      %s313 = smul.addr %s312, 4
      %s314 = scalar_lea.vmem %s1, %s313
      %p315 = scmp.lt.s32.totalorder %s21, 1
      %s316 = scalar_select %p315, %s21, 1
      %s317 = smul.addr %s316, 18
      %s318 = smul.addr %s317, 4
      %s319 = scalar_lea.vmem %s2, %s318
      %p320 = scmp.lt.s32.totalorder %s21, 1
      %s321 = scalar_select %p320, %s21, 1
      %s322 = smul.addr %s321, 18
      %s323 = smul.addr %s322, 4
      %s324 = scalar_lea.vmem %s3, %s323
      %s325 = smul.u32 2, %s22
      %p326 = scmp.lt.s32.totalorder %s21, 1
      %s327 = scalar_select %p326, %s21, 1
      %p328 = scmp.lt.s32.totalorder %s325, 7
      %s329 = scalar_select %p328, %s325, 7
      %s330 = smul.addr %s327, 8
      %s331 = sadd.s32 %s329, %s330
      %s332 = smul.addr %s331, 4
      %s333 = scalar_lea.vmem %s6, %s332
      %s334 = smul.u32 2, %s22
      %s336 = smul.u32 %s22, 2
      %s337 = smul.u32 %s336, 2
      %s338 = smul.addr %s337, 4
      %s339 = scalar_lea.vmem %s309, %s338
      %v340 = vld [vmem:[%s339] sm:$0xf]
      %v341 = vld [vmem:[%s339 + $0x8] sm:$0xf]
      %v342 = vld [vmem:[%s4] sm:$0xf]
      %s343 = smul.addr %s337, 4
      %s344 = scalar_lea.vmem %s314, %s343
      %v345 = vld [vmem:[%s344] sm:$0xf]
      %v346 = vld [vmem:[%s344 + $0x8] sm:$0xf]
      %s347 = scalar_lea.vmem %s4, 4
      %v348 = vld [vmem:[%s347] sm:$0xf]
      %v351 = vunpack.c.l.b16 %v345
      %v352 = vunpack.c.l.b16 %v346
      %v353 = vpack.c.b16 %v352, %v351
      %vm354 = vcmask 64512
      %v356 = vsel %vm354, %v353, 0
      %vm358 = vcmask 1043456
      %v360 = vsel %vm358, %v348, 0
      %362 = vmatpush.bf16.msra.mxu0 0
      %363 = vmatpush.bf16.msra.mxu0 0
      %364 = vmatpush.bf16.msra.mxu0 0
      %365 = vmatpush.bf16.msra.mxu0 0
      %366 = vmatpush.bf16.msra.mxu0 0
      %367 = vmatpush.bf16.msra.mxu0 0
      %368 = vmatpush.bf16.msra.mxu0 0
      %369 = vmatpush.bf16.msra.mxu0 %v360
      %370 = vmatmul.bf16.gmra.mxu0 %v356
      %v371 = vpop.f32.mrf.mxu0
      %v372 = vadd.f32 0.0, %v371
      %v373 = vpop.f32.mrf.mxu0
      %v374 = vadd.f32 0.0, %v373
      %375 = vdwg.mxu0
      %v378 = vunpack.c.l.b16 %v340
      %v379 = vunpack.c.l.b16 %v341
      %v380 = vpack.c.b16 %v379, %v378
      %v382 = vsel %vm354, %v380, 0
      %v385 = vsel %vm358, %v342, 0
      %387 = vmatpush.bf16.msra.mxu0 0
      %388 = vmatpush.bf16.msra.mxu0 0
      %389 = vmatpush.bf16.msra.mxu0 0
      %390 = vmatpush.bf16.msra.mxu0 0
      %391 = vmatpush.bf16.msra.mxu0 0
      %392 = vmatpush.bf16.msra.mxu0 0
      %393 = vmatpush.bf16.msra.mxu0 0
      %394 = vmatpush.bf16.msra.mxu0 %v385
      %395 = vmatmul.bf16.gmra.mxu0 %v382
      %v396 = vpop.f32.mrf.mxu0
      %v397 = vadd.f32 %v372, %v396
      %v398 = vpop.f32.mrf.mxu0
      %v399 = vadd.f32 %v374, %v398
      %400 = vdwg.mxu0
      %v401 = vld [vmem:[%s339] sm:$0xf]
      %v402 = vld [vmem:[%s339 + $0x4] sm:$0x1]
      %v403 = vld [vmem:[%s339 + $0x8] sm:$0xf]
      %v404 = vld [vmem:[%s339 + $0xc] sm:$0x1]
      %vm405 = vsmask.f32 3328
      %vm406 = vsmask.f32 7440
      %vm407 = vmor %vm405, %vm406
      %v409 = vshrl.u32 %v401, 16
      %v411 = vrot.slane %v409, 4
      %v412 = vshll.u32 %v401, 16
      %v414 = vrot.slane %v412, 5
      %v415 = vor.u32 %v411, %v414
      %v416 = vrot.slane %v415, 4
      %v418 = vshll.u32 %v402, 16
      %v420 = vrot.slane %v418, 5
      %v421 = vsel %vm407, %v416, %v420
      %v423 = vshrl.u32 %v403, 16
      %v425 = vrot.slane %v423, 4
      %v426 = vshll.u32 %v403, 16
      %v428 = vrot.slane %v426, 5
      %v429 = vor.u32 %v425, %v428
      %v430 = vrot.slane %v429, 4
      %v432 = vshll.u32 %v404, 16
      %v434 = vrot.slane %v432, 5
      %v435 = vsel %vm407, %v430, %v434
      %s436 = scalar_lea.vmem %s4, 8
      %v437 = vld [vmem:[%s436] sm:$0xf]
      %v438 = vunpack.c.l.b16 %v421
      %v439 = vunpack.c.l.b16 %v435
      %v440 = vpack.c.b16 %v439, %v438
      %v442 = vsel %vm354, %v440, 0
      %v445 = vsel %vm358, %v437, 0
      %447 = vmatpush.bf16.msra.mxu0 0
      %448 = vmatpush.bf16.msra.mxu0 0
      %449 = vmatpush.bf16.msra.mxu0 0
      %450 = vmatpush.bf16.msra.mxu0 0
      %451 = vmatpush.bf16.msra.mxu0 0
      %452 = vmatpush.bf16.msra.mxu0 0
      %453 = vmatpush.bf16.msra.mxu0 0
      %454 = vmatpush.bf16.msra.mxu0 %v445
      %455 = vmatmul.bf16.gmra.mxu0 %v442
      %v456 = vpop.f32.mrf.mxu0
      %v457 = vadd.f32 0.0, %v456
      %v458 = vpop.f32.mrf.mxu0
      %v459 = vadd.f32 0.0, %v458
      %460 = vdwg.mxu0
      %v461 = vadd.f32 %v397, %v457
      %v462 = vadd.f32 %v399, %v459
      %s463 = smul.addr %s337, 4
      %s464 = scalar_lea.vmem %s319, %s463
      %v465 = vld [vmem:[%s464] sm:$0xf]
      %v466 = vld [vmem:[%s464 + $0x8] sm:$0xf]
      %s467 = scalar_lea.vmem %s4, 12
      %v468 = vld [vmem:[%s467] sm:$0xf]
      %v471 = vunpack.c.l.b16 %v465
      %v472 = vunpack.c.l.b16 %v466
      %v473 = vpack.c.b16 %v472, %v471
      %v475 = vsel %vm354, %v473, 0
      %v478 = vsel %vm358, %v468, 0
      %480 = vmatpush.bf16.msra.mxu0 0
      %481 = vmatpush.bf16.msra.mxu0 0
      %482 = vmatpush.bf16.msra.mxu0 0
      %483 = vmatpush.bf16.msra.mxu0 0
      %484 = vmatpush.bf16.msra.mxu0 0
      %485 = vmatpush.bf16.msra.mxu0 0
      %486 = vmatpush.bf16.msra.mxu0 0
      %487 = vmatpush.bf16.msra.mxu0 %v478
      %488 = vmatmul.bf16.gmra.mxu0 %v475
      %v489 = vpop.f32.mrf.mxu0
      %v490 = vadd.f32 0.0, %v489
      %v491 = vpop.f32.mrf.mxu0
      %v492 = vadd.f32 0.0, %v491
      %493 = vdwg.mxu0
      %v494 = vadd.f32 %v461, %v490
      %v495 = vadd.f32 %v462, %v492
      %s496 = smul.addr %s337, 4
      %s497 = scalar_lea.vmem %s324, %s496
      %v498 = vld [vmem:[%s497] sm:$0xf]
      %v499 = vld [vmem:[%s497 + $0x8] sm:$0xf]
      %s500 = scalar_lea.vmem %s4, 16
      %v501 = vld [vmem:[%s500] sm:$0xf]
      %v504 = vunpack.c.l.b16 %v498
      %v505 = vunpack.c.l.b16 %v499
      %v506 = vpack.c.b16 %v505, %v504
      %v508 = vsel %vm354, %v506, 0
      %v511 = vsel %vm358, %v501, 0
      %513 = vmatpush.bf16.msra.mxu0 0
      %514 = vmatpush.bf16.msra.mxu0 0
      %515 = vmatpush.bf16.msra.mxu0 0
      %516 = vmatpush.bf16.msra.mxu0 0
      %517 = vmatpush.bf16.msra.mxu0 0
      %518 = vmatpush.bf16.msra.mxu0 0
      %519 = vmatpush.bf16.msra.mxu0 0
      %520 = vmatpush.bf16.msra.mxu0 %v511
      %521 = vmatmul.bf16.gmra.mxu0 %v508
      %v522 = vpop.f32.mrf.mxu0
      %v523 = vadd.f32 0.0, %v522
      %v524 = vpop.f32.mrf.mxu0
      %v525 = vadd.f32 0.0, %v524
      %526 = vdwg.mxu0
      %v527 = vadd.f32 %v494, %v523
      %v528 = vadd.f32 %v495, %v525
      %v529 = vld [vmem:[%s464] sm:$0xf]
      %v530 = vld [vmem:[%s464 + $0x4] sm:$0x1]
      %v531 = vld [vmem:[%s464 + $0x8] sm:$0xf]
      %v532 = vld [vmem:[%s464 + $0xc] sm:$0x1]
      %v534 = vshrl.u32 %v529, 16
      %v536 = vrot.slane %v534, 4
      %v537 = vshll.u32 %v529, 16
      %v539 = vrot.slane %v537, 5
      %v540 = vor.u32 %v536, %v539
      %v541 = vrot.slane %v540, 4
      %v543 = vshll.u32 %v530, 16
      %v545 = vrot.slane %v543, 5
      %v546 = vsel %vm407, %v541, %v545
      %v548 = vshrl.u32 %v531, 16
      %v550 = vrot.slane %v548, 4
      %v551 = vshll.u32 %v531, 16
      %v553 = vrot.slane %v551, 5
      %v554 = vor.u32 %v550, %v553
      %v555 = vrot.slane %v554, 4
      %v557 = vshll.u32 %v532, 16
      %v559 = vrot.slane %v557, 5
      %v560 = vsel %vm407, %v555, %v559
      %s561 = scalar_lea.vmem %s4, 20
      %v562 = vld [vmem:[%s561] sm:$0xf]
      %v563 = vunpack.c.l.b16 %v546
      %v564 = vunpack.c.l.b16 %v560
      %v565 = vpack.c.b16 %v564, %v563
      %v567 = vsel %vm354, %v565, 0
      %v570 = vsel %vm358, %v562, 0
      %572 = vmatpush.bf16.msra.mxu0 0
      %573 = vmatpush.bf16.msra.mxu0 0
      %574 = vmatpush.bf16.msra.mxu0 0
      %575 = vmatpush.bf16.msra.mxu0 0
      %576 = vmatpush.bf16.msra.mxu0 0
      %577 = vmatpush.bf16.msra.mxu0 0
      %578 = vmatpush.bf16.msra.mxu0 0
      %579 = vmatpush.bf16.msra.mxu0 %v570
      %580 = vmatmul.bf16.gmra.mxu0 %v567
      %v581 = vpop.f32.mrf.mxu0
      %v582 = vadd.f32 0.0, %v581
      %v583 = vpop.f32.mrf.mxu0
      %v584 = vadd.f32 0.0, %v583
      %585 = vdwg.mxu0
      %v586 = vadd.f32 %v527, %v582
      %v587 = vadd.f32 %v528, %v584
      %s588 = sadd.s32 %s336, 1
      %s589 = smul.u32 %s588, 2
      %s590 = smul.addr %s589, 4
      %s591 = scalar_lea.vmem %s309, %s590
      %v592 = vld [vmem:[%s591] sm:$0xf]
      %v593 = vld [vmem:[%s591 + $0x8] sm:$0xf]
      %s594 = scalar_lea.vmem %s4, 24
      %v595 = vld [vmem:[%s594] sm:$0xf]
      %v598 = vunpack.c.l.b16 %v592
      %v599 = vunpack.c.l.b16 %v593
      %v600 = vpack.c.b16 %v599, %v598
      %v602 = vsel %vm354, %v600, 0
      %v605 = vsel %vm358, %v595, 0
      %607 = vmatpush.bf16.msra.mxu0 0
      %608 = vmatpush.bf16.msra.mxu0 0
      %609 = vmatpush.bf16.msra.mxu0 0
      %610 = vmatpush.bf16.msra.mxu0 0
      %611 = vmatpush.bf16.msra.mxu0 0
      %612 = vmatpush.bf16.msra.mxu0 0
      %613 = vmatpush.bf16.msra.mxu0 0
      %614 = vmatpush.bf16.msra.mxu0 %v605
      %615 = vmatmul.bf16.gmra.mxu0 %v602
      %v616 = vpop.f32.mrf.mxu0
      %v617 = vadd.f32 0.0, %v616
      %v618 = vpop.f32.mrf.mxu0
      %v619 = vadd.f32 0.0, %v618
      %620 = vdwg.mxu0
      %v621 = vadd.f32 %v586, %v617
      %v622 = vadd.f32 %v587, %v619
      %s623 = smul.addr %s589, 4
      %s624 = scalar_lea.vmem %s314, %s623
      %v625 = vld [vmem:[%s624] sm:$0xf]
      %v626 = vld [vmem:[%s624 + $0x8] sm:$0xf]
      %s627 = scalar_lea.vmem %s4, 28
      %v628 = vld [vmem:[%s627] sm:$0xf]
      %v631 = vunpack.c.l.b16 %v625
      %v632 = vunpack.c.l.b16 %v626
      %v633 = vpack.c.b16 %v632, %v631
      %v635 = vsel %vm354, %v633, 0
      %v638 = vsel %vm358, %v628, 0
      %640 = vmatpush.bf16.msra.mxu0 0
      %641 = vmatpush.bf16.msra.mxu0 0
      %642 = vmatpush.bf16.msra.mxu0 0
      %643 = vmatpush.bf16.msra.mxu0 0
      %644 = vmatpush.bf16.msra.mxu0 0
      %645 = vmatpush.bf16.msra.mxu0 0
      %646 = vmatpush.bf16.msra.mxu0 0
      %647 = vmatpush.bf16.msra.mxu0 %v638
      %648 = vmatmul.bf16.gmra.mxu0 %v635
      %v649 = vpop.f32.mrf.mxu0
      %v650 = vadd.f32 0.0, %v649
      %v651 = vpop.f32.mrf.mxu0
      %v652 = vadd.f32 0.0, %v651
      %653 = vdwg.mxu0
      %v654 = vadd.f32 %v621, %v650
      %v655 = vadd.f32 %v622, %v652
      %v656 = vld [vmem:[%s591] sm:$0xf]
      %v657 = vld [vmem:[%s591 + $0x4] sm:$0x1]
      %v658 = vld [vmem:[%s591 + $0x8] sm:$0xf]
      %v659 = vld [vmem:[%s591 + $0xc] sm:$0x1]
      %v661 = vshrl.u32 %v656, 16
      %v663 = vrot.slane %v661, 4
      %v664 = vshll.u32 %v656, 16
      %v666 = vrot.slane %v664, 5
      %v667 = vor.u32 %v663, %v666
      %v668 = vrot.slane %v667, 4
      %v670 = vshll.u32 %v657, 16
      %v672 = vrot.slane %v670, 5
      %v673 = vsel %vm407, %v668, %v672
      %v675 = vshrl.u32 %v658, 16
      %v677 = vrot.slane %v675, 4
      %v678 = vshll.u32 %v658, 16
      %v680 = vrot.slane %v678, 5
      %v681 = vor.u32 %v677, %v680
      %v682 = vrot.slane %v681, 4
      %v684 = vshll.u32 %v659, 16
      %v686 = vrot.slane %v684, 5
      %v687 = vsel %vm407, %v682, %v686
      %s688 = scalar_lea.vmem %s4, 32
      %v689 = vld [vmem:[%s688] sm:$0xf]
      %v690 = vunpack.c.l.b16 %v673
      %v691 = vunpack.c.l.b16 %v687
      %v692 = vpack.c.b16 %v691, %v690
      %v694 = vsel %vm354, %v692, 0
      %v697 = vsel %vm358, %v689, 0
      %699 = vmatpush.bf16.msra.mxu0 0
      %700 = vmatpush.bf16.msra.mxu0 0
      %701 = vmatpush.bf16.msra.mxu0 0
      %702 = vmatpush.bf16.msra.mxu0 0
      %703 = vmatpush.bf16.msra.mxu0 0
      %704 = vmatpush.bf16.msra.mxu0 0
      %705 = vmatpush.bf16.msra.mxu0 0
      %706 = vmatpush.bf16.msra.mxu0 %v697
      %707 = vmatmul.bf16.gmra.mxu0 %v694
      %v708 = vpop.f32.mrf.mxu0
      %v709 = vadd.f32 0.0, %v708
      %v710 = vpop.f32.mrf.mxu0
      %v711 = vadd.f32 0.0, %v710
      %712 = vdwg.mxu0
      %v713 = vadd.f32 %v654, %v709
      %v714 = vadd.f32 %v655, %v711
      %v715 = vld [vmem:[%s5] sm:$0x1]
      %v717 = vperm.slane %v715, 0
      %v719 = vadd.f32 %v713, %v717
      %v720 = vadd.f32 %v714, %v717
      %v721 = vmax.f32 %v719, 0.0
      %v722 = vmax.f32 %v720, 0.0
      %v723 = vpack.c.bf16 %v721, %v721
      %v724 = vpack.c.bf16 %v722, %v722
      %725 = vst [vmem:[%s333] sm:$0xf] %v723
      %726 = vst [vmem:[%s333 + $0x4] sm:$0xf] %v724
      %s727 = smul.u32 2, %s22
      %p728 = scmp.lt.s32.totalorder %s21, 1
      %s729 = scalar_select %p728, %s21, 1
      %p730 = scmp.lt.s32.totalorder %s727, 7
      %s731 = scalar_select %p730, %s727, 7
      %s732 = smul.addr %s729, 8
      %s733 = sadd.s32 %s731, %s732
      %s734 = smul.addr %s733, 4
      %s735 = scalar_lea.vmem %s6, %s734
      // Predicated region
      $region45: #{_lambda_.2} parent=43 // pred_check
        %p736 = pneg %p195
      $region46: #{_lambda_.2} parent=43 // pred_check_branch
        %738 = sbr.rel (%p736) target = $region48
      $region47: #{_lambda_.2} parent=43 // pred_region
        %s739 = smul.u32 2, %s22
      $region48: #{_lambda_.2} parent=43 // pred_fallthru
        _
    $region44: #{_lambda_.2} parent=5 // pred_fallthru
      _
    %p740 = scmp.le.s32.totalorder 2, %s12
    // Predicated region
    $region49: #{_lambda_.2} parent=5 // pred_check
      %p741 = pneg %p740
    $region50: #{_lambda_.2} parent=5 // pred_check_branch
      %743 = sbr.rel (%p741) target = $region52
    $region51: #{_lambda_.2} parent=5 // pred_region
      %s744 = ssub.s32 %s12, 2
      // Predicated region
      $region53: #{_lambda_.2} parent=51 // pred_check
        %p745 = pneg %p201
      $region54: #{_lambda_.2} parent=51 // pred_check_branch
        %747 = sbr.rel (%p745) target = $region56
      $region55: #{_lambda_.2} parent=51 // pred_region
        %s748 = smul.u32 2, %s24
        %p749 = scmp.lt.s32.totalorder %s23, 1
        %s750 = scalar_select %p749, %s23, 1
        %p751 = scmp.lt.s32.totalorder %s748, 7
        %s752 = scalar_select %p751, %s748, 7
        %s753 = smul.addr %s750, 8
        %s754 = sadd.s32 %s752, %s753
        %s755 = smul.addr %s754, 4
        %s756 = scalar_lea.vmem %s6, %s755
      $region56: #{_lambda_.2} parent=51 // pred_fallthru
        _
    $region52: #{_lambda_.2} parent=5 // pred_fallthru
      _
  $region6: #{_lambda_.2} parent=0 // loop_footer
    %s16 = sadd.s32 1, %s12
  $region7: #{_lambda_.2} parent=0 // loop_footer_branch
    %11 = sbr.rel target = $region3
  $region8: #{_lambda_.2} parent=0 // loop_exit
    _

// kernel: _lambda_.3
$region0: #{_lambda_.3}
  #allocation0 [shape = 'u32[]', space=smem, size = 0x4, offset = 0x4, fixed_abs, tag = 'smem constant byte address 0x4 - core index']
  #allocation1 [shape = 'u32[72,128]{1,0:T(1,128)}', space=vmem, size = 0x9000, scoped, tag = 'internal scratch']
  %s0 = inlined_call_operand.vmem [shape: bf16[2,10,10,128], index: 0, kind: input, shape index: {}]
  %s1 = inlined_call_operand.vmem [shape: bf16[2,8,8,8], index: 1, kind: input, shape index: {}]
  %s2 = inlined_call_operand.vmem [shape: bf16[9,128,128], index: 2, kind: input, shape index: {}]
  %s3 = inlined_call_operand.vmem [shape: bf16[8,128], index: 3, kind: input, shape index: {}]
  %s4 = inlined_call_operand.vmem [shape: f32[1,128], index: 4, kind: input, shape index: {}]
  %s5 = inlined_call_operand.vmem [shape: bf16[2,8,8,128], index: 5, kind: output, shape index: {}]
  %s6 = sld [smem:[#allocation0]]
  $region53: #{_lambda_.3} parent=0
    _
  %s8 = ssub.s32 1, %s6
  %s9 = scalar_select 0, %s8, %s6
  loop: start=0, step=1, limit=10
  $region2: #{_lambda_.3} parent=0 // loop_pre_header
    _
  $region3: #{_lambda_.3} parent=0 // loop_header
    %s11 = sphi 0, %s15
    %p12 = scmp.ge.s32.totalorder %s11, 10
    %s18 = sphi 0, %s30
    %s19 = sphi 0, %s26
    %s20 = sphi 0, %s18
    %s21 = sphi 0, %s19
    %s22 = sphi 0, %s20
    %s23 = sphi 0, %s21
    %s33 = sphi 0, %s35
    %s36 = sphi 0, %s33
    %s37 = sphi 0, %s36
    %s53 = sphi 0, %s37
    %s61 = sphi 0, %s63
    %s64 = sphi 0, %s61
    %s65 = sphi 0, %s64
    %s81 = sphi 0, %s65
    %s85 = sphi 0, %s85
    %s87 = sphi 0, %s85
    %s88 = sphi 0, %s87
    %s102 = sphi 0, %s88
    %s106 = sphi 0, %s106
    %s108 = sphi 0, %s106
    %s109 = sphi 0, %s108
    %s123 = sphi 0, %s109
    %s127 = sphi 0, %s127
    %s129 = sphi 0, %s127
    %s130 = sphi 0, %s129
    %s144 = sphi 0, %s130
    %s152 = sphi 0, %s154
    %s155 = sphi 0, %s152
    %s156 = sphi 0, %s155
    %s172 = sphi 0, %s156
  $region4: #{_lambda_.3} parent=0 // loop_header_branch
    %14 = sbr.rel (%p12) target = $region8
  $region5: #{_lambda_.3} parent=0 // loop_body
    %s16 = ssub.s32 %s11, 1
    %s17 = ssub.s32 %s11, 2
    %s24 = sadd.s32 1, %s19
    %p25 = scmp.ge.s32.totalorder %s24, 4
    %s26 = scalar_select %p25, 0, %s24
    %s27 = sadd.s32 1, %s18
    %s28 = scalar_select %p25, %s27, %s18
    %p29 = scmp.ge.s32.totalorder %s28, 2
    %s30 = scalar_select %p29, 0, %s28
    %s31 = ssub.s32 %s18, %s30
    %p32 = scmp.eq.s32.totalorder %s31, 0
    %s34 = sadd.s32 %s33, 1
    %s35 = scalar_select %p32, %s33, %s34
    %p38 = pneg %p32
    %p39 = scmp.eq.s32.totalorder %s11, 7
    %p40 = por %p38, %p39
    %p41 = scmp.ne.s32.totalorder %s33, %s36
    %p42 = scmp.eq.s32.totalorder %s11, 0
    %p43 = por %p41, %p42
    %p44 = scmp.ne.s32.totalorder %s33, %s36
    %p45 = scmp.eq.s32.totalorder %s16, 7
    %p46 = por %p44, %p45
    %p47 = scmp.ne.s32.totalorder %s36, %s37
    %p48 = scmp.eq.s32.totalorder %s16, 0
    %p49 = por %p47, %p48
    %p50 = scmp.ne.s32.totalorder %s36, %s37
    %p51 = scmp.eq.s32.totalorder %s17, 7
    %p52 = por %p50, %p51
    %p54 = scmp.ne.s32.totalorder %s37, %s53
    %p55 = scmp.eq.s32.totalorder %s17, 0
    %p56 = por %p54, %p55
    %s57 = ssub.s32 %s18, %s30
    %s58 = ssub.s32 %s19, %s26
    %s59 = sor.u32 %s57, %s58
    %p60 = scmp.eq.s32.totalorder %s59, 0
    %s62 = sadd.s32 %s61, 1
    %s63 = scalar_select %p60, %s61, %s62
    %p66 = pneg %p60
    %p67 = scmp.eq.s32.totalorder %s11, 7
    %p68 = por %p66, %p67
    %p69 = scmp.ne.s32.totalorder %s61, %s64
    %p70 = scmp.eq.s32.totalorder %s11, 0
    %p71 = por %p69, %p70
    %p72 = scmp.ne.s32.totalorder %s61, %s64
    %p73 = scmp.eq.s32.totalorder %s16, 7
    %p74 = por %p72, %p73
    %p75 = scmp.ne.s32.totalorder %s64, %s65
    %p76 = scmp.eq.s32.totalorder %s16, 0
    %p77 = por %p75, %p76
    %p78 = scmp.ne.s32.totalorder %s64, %s65
    %p79 = scmp.eq.s32.totalorder %s17, 7
    %p80 = por %p78, %p79
    %p82 = scmp.ne.s32.totalorder %s65, %s81
    %p83 = scmp.eq.s32.totalorder %s17, 0
    %p84 = por %p82, %p83
    %s86 = sadd.s32 %s85, 1
    %p89 = scmp.eq.s32.totalorder %s11, 7
    %p90 = scmp.ne.s32.totalorder %s85, %s87
    %p91 = scmp.eq.s32.totalorder %s11, 0
    %p92 = por %p90, %p91
    %p93 = scmp.ne.s32.totalorder %s85, %s87
    %p94 = scmp.eq.s32.totalorder %s16, 7
    %p95 = por %p93, %p94
    %p96 = scmp.ne.s32.totalorder %s87, %s88
    %p97 = scmp.eq.s32.totalorder %s16, 0
    %p98 = por %p96, %p97
    %p99 = scmp.ne.s32.totalorder %s87, %s88
    %p100 = scmp.eq.s32.totalorder %s17, 7
    %p101 = por %p99, %p100
    %p103 = scmp.ne.s32.totalorder %s88, %s102
    %p104 = scmp.eq.s32.totalorder %s17, 0
    %p105 = por %p103, %p104
    %s107 = sadd.s32 %s106, 1
    %p110 = scmp.eq.s32.totalorder %s11, 7
    %p111 = scmp.ne.s32.totalorder %s106, %s108
    %p112 = scmp.eq.s32.totalorder %s11, 0
    %p113 = por %p111, %p112
    %p114 = scmp.ne.s32.totalorder %s106, %s108
    %p115 = scmp.eq.s32.totalorder %s16, 7
    %p116 = por %p114, %p115
    %p117 = scmp.ne.s32.totalorder %s108, %s109
    %p118 = scmp.eq.s32.totalorder %s16, 0
    %p119 = por %p117, %p118
    %p120 = scmp.ne.s32.totalorder %s108, %s109
    %p121 = scmp.eq.s32.totalorder %s17, 7
    %p122 = por %p120, %p121
    %p124 = scmp.ne.s32.totalorder %s109, %s123
    %p125 = scmp.eq.s32.totalorder %s17, 0
    %p126 = por %p124, %p125
    %s128 = sadd.s32 %s127, 1
    %p131 = scmp.eq.s32.totalorder %s11, 7
    %p132 = scmp.ne.s32.totalorder %s127, %s129
    %p133 = scmp.eq.s32.totalorder %s11, 0
    %p134 = por %p132, %p133
    %p135 = scmp.ne.s32.totalorder %s127, %s129
    %p136 = scmp.eq.s32.totalorder %s16, 7
    %p137 = por %p135, %p136
    %p138 = scmp.ne.s32.totalorder %s129, %s130
    %p139 = scmp.eq.s32.totalorder %s16, 0
    %p140 = por %p138, %p139
    %p141 = scmp.ne.s32.totalorder %s129, %s130
    %p142 = scmp.eq.s32.totalorder %s17, 7
    %p143 = por %p141, %p142
    %p145 = scmp.ne.s32.totalorder %s130, %s144
    %p146 = scmp.eq.s32.totalorder %s17, 0
    %p147 = por %p145, %p146
    %s148 = ssub.s32 %s18, %s30
    %s149 = ssub.s32 %s19, %s26
    %s150 = sor.u32 %s148, %s149
    %p151 = scmp.eq.s32.totalorder %s150, 0
    %s153 = sadd.s32 %s152, 1
    %s154 = scalar_select %p151, %s152, %s153
    %p157 = pneg %p151
    %p158 = scmp.eq.s32.totalorder %s11, 7
    %p159 = por %p157, %p158
    %p160 = scmp.ne.s32.totalorder %s152, %s155
    %p161 = scmp.eq.s32.totalorder %s11, 0
    %p162 = por %p160, %p161
    %p163 = scmp.ne.s32.totalorder %s152, %s155
    %p164 = scmp.eq.s32.totalorder %s16, 7
    %p165 = por %p163, %p164
    %p166 = scmp.ne.s32.totalorder %s155, %s156
    %p167 = scmp.eq.s32.totalorder %s16, 0
    %p168 = por %p166, %p167
    %p169 = scmp.ne.s32.totalorder %s155, %s156
    %p170 = scmp.eq.s32.totalorder %s17, 7
    %p171 = por %p169, %p170
    %p173 = scmp.ne.s32.totalorder %s156, %s172
    %p174 = scmp.eq.s32.totalorder %s17, 0
    %p175 = por %p173, %p174
    %p176 = scmp.le.s32.totalorder 1, %s11
    %p177 = scmp.lt.s32.totalorder %s11, 9
    %p178 = pnand %p176, %p177
    %p179 = pneg %p178
    // Predicated region
    $region9: #{_lambda_.3} parent=5 // pred_check
      _
    $region10: #{_lambda_.3} parent=5 // pred_check_branch
      %181 = sbr.rel (%p178) target = $region12
    $region11: #{_lambda_.3} parent=5 // pred_region
      %s182 = ssub.s32 %s11, 1
      // Predicated region
      $region13: #{_lambda_.3} parent=11 // pred_check
        %p183 = pneg %p98
      $region14: #{_lambda_.3} parent=11 // pred_check_branch
        %185 = sbr.rel (%p183) target = $region16
      $region15: #{_lambda_.3} parent=11 // pred_region
        _
      $region16: #{_lambda_.3} parent=11 // pred_fallthru
        _
      // Predicated region
      $region17: #{_lambda_.3} parent=11 // pred_check
        %p186 = pneg %p119
      $region18: #{_lambda_.3} parent=11 // pred_check_branch
        %188 = sbr.rel (%p186) target = $region20
      $region19: #{_lambda_.3} parent=11 // pred_region
        _
      $region20: #{_lambda_.3} parent=11 // pred_fallthru
        _
      // Predicated region
      $region21: #{_lambda_.3} parent=11 // pred_check
        %p189 = pneg %p140
      $region22: #{_lambda_.3} parent=11 // pred_check_branch
        %191 = sbr.rel (%p189) target = $region24
      $region23: #{_lambda_.3} parent=11 // pred_region
        _
      $region24: #{_lambda_.3} parent=11 // pred_fallthru
        _
    $region12: #{_lambda_.3} parent=5 // pred_fallthru
      _
    %p192 = scmp.lt.s32.totalorder %s11, 8
    // Predicated region
    $region25: #{_lambda_.3} parent=5 // pred_check
      %p193 = pneg %p192
    $region26: #{_lambda_.3} parent=5 // pred_check_branch
      %195 = sbr.rel (%p193) target = $region28
    $region27: #{_lambda_.3} parent=5 // pred_region
      // Predicated region
      $region29: #{_lambda_.3} parent=27 // pred_check
        %p196 = pneg %p43
      $region30: #{_lambda_.3} parent=27 // pred_check_branch
        %198 = sbr.rel (%p196) target = $region32
      $region31: #{_lambda_.3} parent=27 // pred_region
        %p199 = scmp.lt.s32.totalorder %s18, 1
        %s200 = scalar_select %p199, %s18, 1
        %s201 = smul.addr %s200, 20
        %s202 = smul.addr %s201, 4
        %s203 = scalar_lea.vmem %s0, %s202
      $region32: #{_lambda_.3} parent=27 // pred_fallthru
        _
      // Predicated region
      $region33: #{_lambda_.3} parent=27 // pred_check
        %p204 = pneg %p71
      $region34: #{_lambda_.3} parent=27 // pred_check_branch
        %206 = sbr.rel (%p204) target = $region36
      $region35: #{_lambda_.3} parent=27 // pred_region
        %s207 = smul.u32 2, %s19
        %p208 = scmp.lt.s32.totalorder %s18, 1
        %s209 = scalar_select %p208, %s18, 1
        %p210 = scmp.lt.s32.totalorder %s207, 7
        %s211 = scalar_select %p210, %s207, 7
        %s212 = smul.addr %s209, 8
        %s213 = sadd.s32 %s211, %s212
        %s214 = smul.addr %s213, 4
        %s215 = scalar_lea.vmem %s1, %s214
        %s216 = smul.u32 2, %s19
      $region36: #{_lambda_.3} parent=27 // pred_fallthru
        _
    $region28: #{_lambda_.3} parent=5 // pred_fallthru
      _
    %p217 = scmp.le.s32.totalorder 1, %s11
    %p218 = scmp.lt.s32.totalorder %s11, 9
    %p219 = pnand %p217, %p218
    %p220 = pneg %p219
    // Predicated region
    $region37: #{_lambda_.3} parent=5 // pred_check
      _
    $region38: #{_lambda_.3} parent=5 // pred_check_branch
      %222 = sbr.rel (%p219) target = $region40
    $region39: #{_lambda_.3} parent=5 // pred_region
      %s223 = ssub.s32 %s11, 1
      %p224 = scmp.lt.s32.totalorder %s20, 1
      %s225 = scalar_select %p224, %s20, 1
      %s226 = smul.addr %s225, 20
      %s227 = smul.addr %s226, 4
      %s228 = scalar_lea.vmem %s0, %s227
      %p229 = pneg %p49
      %p230 = pneg %p46
      %s231 = smul.u32 2, %s21
      %p232 = scmp.lt.s32.totalorder %s20, 1
      %s233 = scalar_select %p232, %s20, 1
      %p234 = scmp.lt.s32.totalorder %s231, 7
      %s235 = scalar_select %p234, %s231, 7
      %s236 = smul.addr %s233, 8
      %s237 = sadd.s32 %s235, %s236
      %s238 = smul.addr %s237, 4
      %s239 = scalar_lea.vmem %s1, %s238
      %p240 = pneg %p77
      %p241 = pneg %p74
      %p242 = pneg %p98
      %p243 = pneg %p95
      %p244 = pneg %p119
      %p245 = pneg %p116
      %p246 = pneg %p140
      %p247 = pneg %p137
      %p248 = pneg %p168
      %p249 = pneg %p165
      %s250 = smul.u32 2, %s21
      %p251 = scmp.lt.s32.totalorder %s20, 1
      %s252 = scalar_select %p251, %s20, 1
      %p253 = scmp.lt.s32.totalorder %s250, 7
      %s254 = scalar_select %p253, %s250, 7
      %s255 = smul.addr %s252, 8
      %s256 = sadd.s32 %s254, %s255
      %s257 = smul.addr %s256, 4
      %s258 = scalar_lea.vmem %s5, %s257
      %p259 = scmp.lt.s32.totalorder %s20, 1
      %s260 = scalar_select %p259, %s20, 1
      %s261 = smul.addr %s260, 20
      %s262 = smul.addr %s261, 4
      %s263 = scalar_lea.vmem %s0, %s262
      %s264 = smul.u32 2, %s21
      %p265 = scmp.lt.s32.totalorder %s20, 1
      %s266 = scalar_select %p265, %s20, 1
      %p267 = scmp.lt.s32.totalorder %s264, 7
      %s268 = scalar_select %p267, %s264, 7
      %s269 = smul.addr %s266, 8
      %s270 = sadd.s32 %s268, %s269
      %s271 = smul.addr %s270, 4
      %s272 = scalar_lea.vmem %s1, %s271
      %s273 = smul.u32 2, %s21
      %s274 = smul.u32 2, %s21
      %p275 = scmp.lt.s32.totalorder %s20, 1
      %s276 = scalar_select %p275, %s20, 1
      %p277 = scmp.lt.s32.totalorder %s274, 7
      %s278 = scalar_select %p277, %s274, 7
      %s279 = smul.addr %s276, 8
      %s280 = sadd.s32 %s278, %s279
      %s281 = smul.addr %s280, 4
      %s282 = scalar_lea.vmem %s5, %s281
      %s283 = smul.u32 2, %s21
      %s285 = smul.u32 %s21, 2
      %s286 = smul.u32 %s285, 2
      %s287 = smul.addr %s286, 4
      %s288 = scalar_lea.vmem %s263, %s287
      %v289 = vld [vmem:[%s288] sm:$0xf]
      %v290 = vld [vmem:[%s288 + $0x8] sm:$0xf]
      %v291 = vld [vmem:[%s2] sm:$0xf]
      %v292 = vld [vmem:[%s2 + $0x4] sm:$0xf]
      %v293 = vld [vmem:[%s2 + $0x8] sm:$0xf]
      %v294 = vld [vmem:[%s2 + $0xc] sm:$0xf]
      %v295 = vld [vmem:[%s2 + $0x10] sm:$0xf]
      %v296 = vld [vmem:[%s2 + $0x14] sm:$0xf]
      %v297 = vld [vmem:[%s2 + $0x18] sm:$0xf]
      %v298 = vld [vmem:[%s2 + $0x1c] sm:$0xf]
      %v299 = vld [vmem:[%s2 + $0x20] sm:$0xf]
      %v300 = vld [vmem:[%s2 + $0x24] sm:$0xf]
      %v301 = vld [vmem:[%s2 + $0x28] sm:$0xf]
      %v302 = vld [vmem:[%s2 + $0x2c] sm:$0xf]
      %v303 = vld [vmem:[%s2 + $0x30] sm:$0xf]
      %v304 = vld [vmem:[%s2 + $0x34] sm:$0xf]
      %v305 = vld [vmem:[%s2 + $0x38] sm:$0xf]
      %v306 = vld [vmem:[%s2 + $0x3c] sm:$0xf]
      %v307 = vld [vmem:[%s288 + $0x4] sm:$0x1]
      %v308 = vld [vmem:[%s288 + $0xc] sm:$0x1]
      %vm309 = vsmask.f32 3328
      %vm310 = vsmask.f32 7440
      %vm311 = vmor %vm309, %vm310
      %v313 = vshrl.u32 %v289, 16
      %v315 = vrot.slane %v313, 4
      %v316 = vshll.u32 %v289, 16
      %v318 = vrot.slane %v316, 5
      %v319 = vor.u32 %v315, %v318
      %v320 = vrot.slane %v319, 4
      %v322 = vshll.u32 %v307, 16
      %v324 = vrot.slane %v322, 5
      %v325 = vsel %vm311, %v320, %v324
      %v327 = vshrl.u32 %v290, 16
      %v329 = vrot.slane %v327, 4
      %v330 = vshll.u32 %v290, 16
      %v332 = vrot.slane %v330, 5
      %v333 = vor.u32 %v329, %v332
      %v334 = vrot.slane %v333, 4
      %v336 = vshll.u32 %v308, 16
      %v338 = vrot.slane %v336, 5
      %v339 = vsel %vm311, %v334, %v338
      %s340 = scalar_lea.vmem %s2, 64
      %v341 = vld [vmem:[%s340] sm:$0xf]
      %v342 = vld [vmem:[%s340 + $0x4] sm:$0xf]
      %v343 = vld [vmem:[%s340 + $0x8] sm:$0xf]
      %v344 = vld [vmem:[%s340 + $0xc] sm:$0xf]
      %v345 = vld [vmem:[%s340 + $0x10] sm:$0xf]
      %v346 = vld [vmem:[%s340 + $0x14] sm:$0xf]
      %v347 = vld [vmem:[%s340 + $0x18] sm:$0xf]
      %v348 = vld [vmem:[%s340 + $0x1c] sm:$0xf]
      %v349 = vld [vmem:[%s340 + $0x20] sm:$0xf]
      %v350 = vld [vmem:[%s340 + $0x24] sm:$0xf]
      %v351 = vld [vmem:[%s340 + $0x28] sm:$0xf]
      %v352 = vld [vmem:[%s340 + $0x2c] sm:$0xf]
      %v353 = vld [vmem:[%s340 + $0x30] sm:$0xf]
      %v354 = vld [vmem:[%s340 + $0x34] sm:$0xf]
      %v355 = vld [vmem:[%s340 + $0x38] sm:$0xf]
      %v356 = vld [vmem:[%s340 + $0x3c] sm:$0xf]
      %v357 = vunpack.c.l.b16 %v325
      %v358 = vunpack.c.l.b16 %v339
      %v359 = vpack.c.b16 %v358, %v357
      %v377 = vunpack.c.l.b16 %v341
      %v378 = vunpack.c.l.b16 %v342
      %v379 = vunpack.c.l.b16 %v343
      %v380 = vunpack.c.l.b16 %v344
      %v381 = vunpack.c.l.b16 %v345
      %v382 = vunpack.c.l.b16 %v346
      %v383 = vunpack.c.l.b16 %v347
      %v384 = vunpack.c.l.b16 %v348
      %v385 = vunpack.c.l.b16 %v349
      %v386 = vunpack.c.l.b16 %v350
      %v387 = vunpack.c.l.b16 %v351
      %v388 = vunpack.c.l.b16 %v352
      %v389 = vunpack.c.l.b16 %v353
      %v390 = vunpack.c.l.b16 %v354
      %v391 = vunpack.c.l.b16 %v355
      %v392 = vunpack.c.l.b16 %v356
      %v393 = vpack.c.b16 %v378, %v377
      %v394 = vpack.c.b16 %v380, %v379
      %v395 = vpack.c.b16 %v382, %v381
      %v396 = vpack.c.b16 %v384, %v383
      %v397 = vpack.c.b16 %v386, %v385
      %v398 = vpack.c.b16 %v388, %v387
      %v399 = vpack.c.b16 %v390, %v389
      %v400 = vpack.c.b16 %v392, %v391
      %409 = vmatpush.bf16.msra.mxu0 %v400
      %410 = vmatpush.bf16.msra.mxu0 %v399
      %411 = vmatpush.bf16.msra.mxu0 %v398
      %412 = vmatpush.bf16.msra.mxu0 %v397
      %413 = vmatpush.bf16.msra.mxu0 %v396
      %414 = vmatpush.bf16.msra.mxu0 %v395
      %415 = vmatpush.bf16.msra.mxu0 %v394
      %416 = vmatpush.bf16.msra.mxu0 %v393
      %417 = vmatmul.bf16.gmra.mxu0 %v359
      %v418 = vpop.f32.mrf.mxu0
      %v419 = vadd.f32 0.0, %v418
      %v420 = vpop.f32.mrf.mxu0
      %v421 = vadd.f32 0.0, %v420
      %422 = vdwg.mxu0
      %v425 = vunpack.c.l.b16 %v289
      %v426 = vunpack.c.l.b16 %v290
      %v427 = vpack.c.b16 %v426, %v425
      %v445 = vunpack.c.l.b16 %v291
      %v446 = vunpack.c.l.b16 %v292
      %v447 = vunpack.c.l.b16 %v293
      %v448 = vunpack.c.l.b16 %v294
      %v449 = vunpack.c.l.b16 %v295
      %v450 = vunpack.c.l.b16 %v296
      %v451 = vunpack.c.l.b16 %v297
      %v452 = vunpack.c.l.b16 %v298
      %v453 = vunpack.c.l.b16 %v299
      %v454 = vunpack.c.l.b16 %v300
      %v455 = vunpack.c.l.b16 %v301
      %v456 = vunpack.c.l.b16 %v302
      %v457 = vunpack.c.l.b16 %v303
      %v458 = vunpack.c.l.b16 %v304
      %v459 = vunpack.c.l.b16 %v305
      %v460 = vunpack.c.l.b16 %v306
      %v461 = vpack.c.b16 %v446, %v445
      %v462 = vpack.c.b16 %v448, %v447
      %v463 = vpack.c.b16 %v450, %v449
      %v464 = vpack.c.b16 %v452, %v451
      %v465 = vpack.c.b16 %v454, %v453
      %v466 = vpack.c.b16 %v456, %v455
      %v467 = vpack.c.b16 %v458, %v457
      %v468 = vpack.c.b16 %v460, %v459
      %477 = vmatpush.bf16.msra.mxu0 %v468
      %478 = vmatpush.bf16.msra.mxu0 %v467
      %479 = vmatpush.bf16.msra.mxu0 %v466
      %480 = vmatpush.bf16.msra.mxu0 %v465
      %481 = vmatpush.bf16.msra.mxu0 %v464
      %482 = vmatpush.bf16.msra.mxu0 %v463
      %483 = vmatpush.bf16.msra.mxu0 %v462
      %484 = vmatpush.bf16.msra.mxu0 %v461
      %485 = vmatmul.bf16.gmra.mxu0 %v427
      %v486 = vpop.f32.mrf.mxu0
      %v487 = vadd.f32 %v419, %v486
      %v488 = vpop.f32.mrf.mxu0
      %v489 = vadd.f32 %v421, %v488
      %490 = vdwg.mxu0
      %v491 = vld [vmem:[%s288] sm:$0xe]
      %v492 = vld [vmem:[%s288 + $0x8] sm:$0xe]
      %vm497 = vcmask 1042432
      %vm498 = vcmask 1046532
      %vm499 = vmor %vm497, %vm498
      %v500 = vrot.slane %v491, 5
      %v501 = vrot.slane %v500, 4
      %v502 = vrot.slane %v307, 5
      %v503 = vsel %vm499, %v501, %v502
      %v504 = vrot.slane %v492, 5
      %v505 = vrot.slane %v504, 4
      %v506 = vrot.slane %v308, 5
      %v507 = vsel %vm499, %v505, %v506
      %s508 = scalar_lea.vmem %s2, 128
      %v509 = vld [vmem:[%s508] sm:$0xf]
      %v510 = vld [vmem:[%s508 + $0x4] sm:$0xf]
      %v511 = vld [vmem:[%s508 + $0x8] sm:$0xf]
      %v512 = vld [vmem:[%s508 + $0xc] sm:$0xf]
      %v513 = vld [vmem:[%s508 + $0x10] sm:$0xf]
      %v514 = vld [vmem:[%s508 + $0x14] sm:$0xf]
      %v515 = vld [vmem:[%s508 + $0x18] sm:$0xf]
      %v516 = vld [vmem:[%s508 + $0x1c] sm:$0xf]
      %v517 = vld [vmem:[%s508 + $0x20] sm:$0xf]
      %v518 = vld [vmem:[%s508 + $0x24] sm:$0xf]
      %v519 = vld [vmem:[%s508 + $0x28] sm:$0xf]
      %v520 = vld [vmem:[%s508 + $0x2c] sm:$0xf]
      %v521 = vld [vmem:[%s508 + $0x30] sm:$0xf]
      %v522 = vld [vmem:[%s508 + $0x34] sm:$0xf]
      %v523 = vld [vmem:[%s508 + $0x38] sm:$0xf]
      %v524 = vld [vmem:[%s508 + $0x3c] sm:$0xf]
      %v525 = vunpack.c.l.b16 %v503
      %v526 = vunpack.c.l.b16 %v507
      %v527 = vpack.c.b16 %v526, %v525
      %v545 = vunpack.c.l.b16 %v509
      %v546 = vunpack.c.l.b16 %v510
      %v547 = vunpack.c.l.b16 %v511
      %v548 = vunpack.c.l.b16 %v512
      %v549 = vunpack.c.l.b16 %v513
      %v550 = vunpack.c.l.b16 %v514
      %v551 = vunpack.c.l.b16 %v515
      %v552 = vunpack.c.l.b16 %v516
      %v553 = vunpack.c.l.b16 %v517
      %v554 = vunpack.c.l.b16 %v518
      %v555 = vunpack.c.l.b16 %v519
      %v556 = vunpack.c.l.b16 %v520
      %v557 = vunpack.c.l.b16 %v521
      %v558 = vunpack.c.l.b16 %v522
      %v559 = vunpack.c.l.b16 %v523
      %v560 = vunpack.c.l.b16 %v524
      %v561 = vpack.c.b16 %v546, %v545
      %v562 = vpack.c.b16 %v548, %v547
      %v563 = vpack.c.b16 %v550, %v549
      %v564 = vpack.c.b16 %v552, %v551
      %v565 = vpack.c.b16 %v554, %v553
      %v566 = vpack.c.b16 %v556, %v555
      %v567 = vpack.c.b16 %v558, %v557
      %v568 = vpack.c.b16 %v560, %v559
      %577 = vmatpush.bf16.msra.mxu0 %v568
      %578 = vmatpush.bf16.msra.mxu0 %v567
      %579 = vmatpush.bf16.msra.mxu0 %v566
      %580 = vmatpush.bf16.msra.mxu0 %v565
      %581 = vmatpush.bf16.msra.mxu0 %v564
      %582 = vmatpush.bf16.msra.mxu0 %v563
      %583 = vmatpush.bf16.msra.mxu0 %v562
      %584 = vmatpush.bf16.msra.mxu0 %v561
      %585 = vmatmul.bf16.gmra.mxu0 %v527
      %v586 = vpop.f32.mrf.mxu0
      %v587 = vadd.f32 0.0, %v586
      %v588 = vpop.f32.mrf.mxu0
      %v589 = vadd.f32 0.0, %v588
      %590 = vdwg.mxu0
      %v591 = vadd.f32 %v487, %v587
      %v592 = vadd.f32 %v489, %v589
      %s593 = sadd.s32 %s285, 1
      %s594 = smul.u32 %s593, 2
      %s595 = smul.addr %s594, 4
      %s596 = scalar_lea.vmem %s263, %s595
      %v597 = vld [vmem:[%s596] sm:$0xf]
      %v598 = vld [vmem:[%s596 + $0x8] sm:$0xf]
      %s599 = scalar_lea.vmem %s2, 192
      %v600 = vld [vmem:[%s599] sm:$0xf]
      %v601 = vld [vmem:[%s599 + $0x4] sm:$0xf]
      %v602 = vld [vmem:[%s599 + $0x8] sm:$0xf]
      %v603 = vld [vmem:[%s599 + $0xc] sm:$0xf]
      %v604 = vld [vmem:[%s599 + $0x10] sm:$0xf]
      %v605 = vld [vmem:[%s599 + $0x14] sm:$0xf]
      %v606 = vld [vmem:[%s599 + $0x18] sm:$0xf]
      %v607 = vld [vmem:[%s599 + $0x1c] sm:$0xf]
      %v608 = vld [vmem:[%s599 + $0x20] sm:$0xf]
      %v609 = vld [vmem:[%s599 + $0x24] sm:$0xf]
      %v610 = vld [vmem:[%s599 + $0x28] sm:$0xf]
      %v611 = vld [vmem:[%s599 + $0x2c] sm:$0xf]
      %v612 = vld [vmem:[%s599 + $0x30] sm:$0xf]
      %v613 = vld [vmem:[%s599 + $0x34] sm:$0xf]
      %v614 = vld [vmem:[%s599 + $0x38] sm:$0xf]
      %v615 = vld [vmem:[%s599 + $0x3c] sm:$0xf]
      %v618 = vunpack.c.l.b16 %v597
      %v619 = vunpack.c.l.b16 %v598
      %v620 = vpack.c.b16 %v619, %v618
      %v638 = vunpack.c.l.b16 %v600
      %v639 = vunpack.c.l.b16 %v601
      %v640 = vunpack.c.l.b16 %v602
      %v641 = vunpack.c.l.b16 %v603
      %v642 = vunpack.c.l.b16 %v604
      %v643 = vunpack.c.l.b16 %v605
      %v644 = vunpack.c.l.b16 %v606
      %v645 = vunpack.c.l.b16 %v607
      %v646 = vunpack.c.l.b16 %v608
      %v647 = vunpack.c.l.b16 %v609
      %v648 = vunpack.c.l.b16 %v610
      %v649 = vunpack.c.l.b16 %v611
      %v650 = vunpack.c.l.b16 %v612
      %v651 = vunpack.c.l.b16 %v613
      %v652 = vunpack.c.l.b16 %v614
      %v653 = vunpack.c.l.b16 %v615
      %v654 = vpack.c.b16 %v639, %v638
      %v655 = vpack.c.b16 %v641, %v640
      %v656 = vpack.c.b16 %v643, %v642
      %v657 = vpack.c.b16 %v645, %v644
      %v658 = vpack.c.b16 %v647, %v646
      %v659 = vpack.c.b16 %v649, %v648
      %v660 = vpack.c.b16 %v651, %v650
      %v661 = vpack.c.b16 %v653, %v652
      %670 = vmatpush.bf16.msra.mxu0 %v661
      %671 = vmatpush.bf16.msra.mxu0 %v660
      %672 = vmatpush.bf16.msra.mxu0 %v659
      %673 = vmatpush.bf16.msra.mxu0 %v658
      %674 = vmatpush.bf16.msra.mxu0 %v657
      %675 = vmatpush.bf16.msra.mxu0 %v656
      %676 = vmatpush.bf16.msra.mxu0 %v655
      %677 = vmatpush.bf16.msra.mxu0 %v654
      %678 = vmatmul.bf16.gmra.mxu0 %v620
      %v679 = vpop.f32.mrf.mxu0
      %v680 = vadd.f32 0.0, %v679
      %v681 = vpop.f32.mrf.mxu0
      %v682 = vadd.f32 0.0, %v681
      %683 = vdwg.mxu0
      %v684 = vadd.f32 %v591, %v680
      %v685 = vadd.f32 %v592, %v682
      %v686 = vld [vmem:[%s596] sm:$0xf]
      %v687 = vld [vmem:[%s596 + $0x4] sm:$0x1]
      %v688 = vld [vmem:[%s596 + $0x8] sm:$0xf]
      %v689 = vld [vmem:[%s596 + $0xc] sm:$0x1]
      %v691 = vshrl.u32 %v686, 16
      %v693 = vrot.slane %v691, 4
      %v694 = vshll.u32 %v686, 16
      %v696 = vrot.slane %v694, 5
      %v697 = vor.u32 %v693, %v696
      %v698 = vrot.slane %v697, 4
      %v700 = vshll.u32 %v687, 16
      %v702 = vrot.slane %v700, 5
      %v703 = vsel %vm311, %v698, %v702
      %v705 = vshrl.u32 %v688, 16
      %v707 = vrot.slane %v705, 4
      %v708 = vshll.u32 %v688, 16
      %v710 = vrot.slane %v708, 5
      %v711 = vor.u32 %v707, %v710
      %v712 = vrot.slane %v711, 4
      %v714 = vshll.u32 %v689, 16
      %v716 = vrot.slane %v714, 5
      %v717 = vsel %vm311, %v712, %v716
      %s718 = scalar_lea.vmem %s2, 256
      %v719 = vld [vmem:[%s718] sm:$0xf]
      %v720 = vld [vmem:[%s718 + $0x4] sm:$0xf]
      %v721 = vld [vmem:[%s718 + $0x8] sm:$0xf]
      %v722 = vld [vmem:[%s718 + $0xc] sm:$0xf]
      %v723 = vld [vmem:[%s718 + $0x10] sm:$0xf]
      %v724 = vld [vmem:[%s718 + $0x14] sm:$0xf]
      %v725 = vld [vmem:[%s718 + $0x18] sm:$0xf]
      %v726 = vld [vmem:[%s718 + $0x1c] sm:$0xf]
      %v727 = vld [vmem:[%s718 + $0x20] sm:$0xf]
      %v728 = vld [vmem:[%s718 + $0x24] sm:$0xf]
      %v729 = vld [vmem:[%s718 + $0x28] sm:$0xf]
      %v730 = vld [vmem:[%s718 + $0x2c] sm:$0xf]
      %v731 = vld [vmem:[%s718 + $0x30] sm:$0xf]
      %v732 = vld [vmem:[%s718 + $0x34] sm:$0xf]
      %v733 = vld [vmem:[%s718 + $0x38] sm:$0xf]
      %v734 = vld [vmem:[%s718 + $0x3c] sm:$0xf]
      %v735 = vunpack.c.l.b16 %v703
      %v736 = vunpack.c.l.b16 %v717
      %v737 = vpack.c.b16 %v736, %v735
      %v755 = vunpack.c.l.b16 %v719
      %v756 = vunpack.c.l.b16 %v720
      %v757 = vunpack.c.l.b16 %v721
      %v758 = vunpack.c.l.b16 %v722
      %v759 = vunpack.c.l.b16 %v723
      %v760 = vunpack.c.l.b16 %v724
      %v761 = vunpack.c.l.b16 %v725
      %v762 = vunpack.c.l.b16 %v726
      %v763 = vunpack.c.l.b16 %v727
      %v764 = vunpack.c.l.b16 %v728
      %v765 = vunpack.c.l.b16 %v729
      %v766 = vunpack.c.l.b16 %v730
      %v767 = vunpack.c.l.b16 %v731
      %v768 = vunpack.c.l.b16 %v732
      %v769 = vunpack.c.l.b16 %v733
      %v770 = vunpack.c.l.b16 %v734
      %v771 = vpack.c.b16 %v756, %v755
      %v772 = vpack.c.b16 %v758, %v757
      %v773 = vpack.c.b16 %v760, %v759
      %v774 = vpack.c.b16 %v762, %v761
      %v775 = vpack.c.b16 %v764, %v763
      %v776 = vpack.c.b16 %v766, %v765
      %v777 = vpack.c.b16 %v768, %v767
      %v778 = vpack.c.b16 %v770, %v769
      %787 = vmatpush.bf16.msra.mxu0 %v778
      %788 = vmatpush.bf16.msra.mxu0 %v777
      %789 = vmatpush.bf16.msra.mxu0 %v776
      %790 = vmatpush.bf16.msra.mxu0 %v775
      %791 = vmatpush.bf16.msra.mxu0 %v774
      %792 = vmatpush.bf16.msra.mxu0 %v773
      %793 = vmatpush.bf16.msra.mxu0 %v772
      %794 = vmatpush.bf16.msra.mxu0 %v771
      %795 = vmatmul.bf16.gmra.mxu0 %v737
      %v796 = vpop.f32.mrf.mxu0
      %v797 = vadd.f32 0.0, %v796
      %v798 = vpop.f32.mrf.mxu0
      %v799 = vadd.f32 0.0, %v798
      %800 = vdwg.mxu0
      %v801 = vadd.f32 %v684, %v797
      %v802 = vadd.f32 %v685, %v799
      %v803 = vld [vmem:[%s596] sm:$0xe]
      %v804 = vld [vmem:[%s596 + $0x8] sm:$0xe]
      %v809 = vrot.slane %v803, 5
      %v810 = vrot.slane %v809, 4
      %v811 = vrot.slane %v687, 5
      %v812 = vsel %vm499, %v810, %v811
      %v813 = vrot.slane %v804, 5
      %v814 = vrot.slane %v813, 4
      %v815 = vrot.slane %v689, 5
      %v816 = vsel %vm499, %v814, %v815
      %s817 = scalar_lea.vmem %s2, 320
      %v818 = vld [vmem:[%s817] sm:$0xf]
      %v819 = vld [vmem:[%s817 + $0x4] sm:$0xf]
      %v820 = vld [vmem:[%s817 + $0x8] sm:$0xf]
      %v821 = vld [vmem:[%s817 + $0xc] sm:$0xf]
      %v822 = vld [vmem:[%s817 + $0x10] sm:$0xf]
      %v823 = vld [vmem:[%s817 + $0x14] sm:$0xf]
      %v824 = vld [vmem:[%s817 + $0x18] sm:$0xf]
      %v825 = vld [vmem:[%s817 + $0x1c] sm:$0xf]
      %v826 = vld [vmem:[%s817 + $0x20] sm:$0xf]
      %v827 = vld [vmem:[%s817 + $0x24] sm:$0xf]
      %v828 = vld [vmem:[%s817 + $0x28] sm:$0xf]
      %v829 = vld [vmem:[%s817 + $0x2c] sm:$0xf]
      %v830 = vld [vmem:[%s817 + $0x30] sm:$0xf]
      %v831 = vld [vmem:[%s817 + $0x34] sm:$0xf]
      %v832 = vld [vmem:[%s817 + $0x38] sm:$0xf]
      %v833 = vld [vmem:[%s817 + $0x3c] sm:$0xf]
      %v834 = vunpack.c.l.b16 %v812
      %v835 = vunpack.c.l.b16 %v816
      %v836 = vpack.c.b16 %v835, %v834
      %v854 = vunpack.c.l.b16 %v818
      %v855 = vunpack.c.l.b16 %v819
      %v856 = vunpack.c.l.b16 %v820
      %v857 = vunpack.c.l.b16 %v821
      %v858 = vunpack.c.l.b16 %v822
      %v859 = vunpack.c.l.b16 %v823
      %v860 = vunpack.c.l.b16 %v824
      %v861 = vunpack.c.l.b16 %v825
      %v862 = vunpack.c.l.b16 %v826
      %v863 = vunpack.c.l.b16 %v827
      %v864 = vunpack.c.l.b16 %v828
      %v865 = vunpack.c.l.b16 %v829
      %v866 = vunpack.c.l.b16 %v830
      %v867 = vunpack.c.l.b16 %v831
      %v868 = vunpack.c.l.b16 %v832
      %v869 = vunpack.c.l.b16 %v833
      %v870 = vpack.c.b16 %v855, %v854
      %v871 = vpack.c.b16 %v857, %v856
      %v872 = vpack.c.b16 %v859, %v858
      %v873 = vpack.c.b16 %v861, %v860
      %v874 = vpack.c.b16 %v863, %v862
      %v875 = vpack.c.b16 %v865, %v864
      %v876 = vpack.c.b16 %v867, %v866
      %v877 = vpack.c.b16 %v869, %v868
      %886 = vmatpush.bf16.msra.mxu0 %v877
      %887 = vmatpush.bf16.msra.mxu0 %v876
      %888 = vmatpush.bf16.msra.mxu0 %v875
      %889 = vmatpush.bf16.msra.mxu0 %v874
      %890 = vmatpush.bf16.msra.mxu0 %v873
      %891 = vmatpush.bf16.msra.mxu0 %v872
      %892 = vmatpush.bf16.msra.mxu0 %v871
      %893 = vmatpush.bf16.msra.mxu0 %v870
      %894 = vmatmul.bf16.gmra.mxu0 %v836
      %v895 = vpop.f32.mrf.mxu0
      %v896 = vadd.f32 0.0, %v895
      %v897 = vpop.f32.mrf.mxu0
      %v898 = vadd.f32 0.0, %v897
      %899 = vdwg.mxu0
      %v900 = vadd.f32 %v801, %v896
      %v901 = vadd.f32 %v802, %v898
      %s902 = sadd.s32 %s285, 2
      %s903 = smul.u32 %s902, 2
      %s904 = smul.addr %s903, 4
      %s905 = scalar_lea.vmem %s263, %s904
      %v906 = vld [vmem:[%s905] sm:$0xf]
      %v907 = vld [vmem:[%s905 + $0x8] sm:$0xf]
      %s908 = scalar_lea.vmem %s2, 384
      %v909 = vld [vmem:[%s908] sm:$0xf]
      %v910 = vld [vmem:[%s908 + $0x4] sm:$0xf]
      %v911 = vld [vmem:[%s908 + $0x8] sm:$0xf]
      %v912 = vld [vmem:[%s908 + $0xc] sm:$0xf]
      %v913 = vld [vmem:[%s908 + $0x10] sm:$0xf]
      %v914 = vld [vmem:[%s908 + $0x14] sm:$0xf]
      %v915 = vld [vmem:[%s908 + $0x18] sm:$0xf]
      %v916 = vld [vmem:[%s908 + $0x1c] sm:$0xf]
      %v917 = vld [vmem:[%s908 + $0x20] sm:$0xf]
      %v918 = vld [vmem:[%s908 + $0x24] sm:$0xf]
      %v919 = vld [vmem:[%s908 + $0x28] sm:$0xf]
      %v920 = vld [vmem:[%s908 + $0x2c] sm:$0xf]
      %v921 = vld [vmem:[%s908 + $0x30] sm:$0xf]
      %v922 = vld [vmem:[%s908 + $0x34] sm:$0xf]
      %v923 = vld [vmem:[%s908 + $0x38] sm:$0xf]
      %v924 = vld [vmem:[%s908 + $0x3c] sm:$0xf]
      %v927 = vunpack.c.l.b16 %v906
      %v928 = vunpack.c.l.b16 %v907
      %v929 = vpack.c.b16 %v928, %v927
      %v947 = vunpack.c.l.b16 %v909
      %v948 = vunpack.c.l.b16 %v910
      %v949 = vunpack.c.l.b16 %v911
      %v950 = vunpack.c.l.b16 %v912
      %v951 = vunpack.c.l.b16 %v913
      %v952 = vunpack.c.l.b16 %v914
      %v953 = vunpack.c.l.b16 %v915
      %v954 = vunpack.c.l.b16 %v916
      %v955 = vunpack.c.l.b16 %v917
      %v956 = vunpack.c.l.b16 %v918
      %v957 = vunpack.c.l.b16 %v919
      %v958 = vunpack.c.l.b16 %v920
      %v959 = vunpack.c.l.b16 %v921
      %v960 = vunpack.c.l.b16 %v922
      %v961 = vunpack.c.l.b16 %v923
      %v962 = vunpack.c.l.b16 %v924
      %v963 = vpack.c.b16 %v948, %v947
      %v964 = vpack.c.b16 %v950, %v949
      %v965 = vpack.c.b16 %v952, %v951
      %v966 = vpack.c.b16 %v954, %v953
      %v967 = vpack.c.b16 %v956, %v955
      %v968 = vpack.c.b16 %v958, %v957
      %v969 = vpack.c.b16 %v960, %v959
      %v970 = vpack.c.b16 %v962, %v961
      %979 = vmatpush.bf16.msra.mxu0 %v970
      %980 = vmatpush.bf16.msra.mxu0 %v969
      %981 = vmatpush.bf16.msra.mxu0 %v968
      %982 = vmatpush.bf16.msra.mxu0 %v967
      %983 = vmatpush.bf16.msra.mxu0 %v966
      %984 = vmatpush.bf16.msra.mxu0 %v965
      %985 = vmatpush.bf16.msra.mxu0 %v964
      %986 = vmatpush.bf16.msra.mxu0 %v963
      %987 = vmatmul.bf16.gmra.mxu0 %v929
      %v988 = vpop.f32.mrf.mxu0
      %v989 = vadd.f32 0.0, %v988
      %v990 = vpop.f32.mrf.mxu0
      %v991 = vadd.f32 0.0, %v990
      %992 = vdwg.mxu0
      %v993 = vadd.f32 %v900, %v989
      %v994 = vadd.f32 %v901, %v991
      %v995 = vld [vmem:[%s905] sm:$0xf]
      %v996 = vld [vmem:[%s905 + $0x4] sm:$0x1]
      %v997 = vld [vmem:[%s905 + $0x8] sm:$0xf]
      %v998 = vld [vmem:[%s905 + $0xc] sm:$0x1]
      %v1000 = vshrl.u32 %v995, 16
      %v1002 = vrot.slane %v1000, 4
      %v1003 = vshll.u32 %v995, 16
      %v1005 = vrot.slane %v1003, 5
      %v1006 = vor.u32 %v1002, %v1005
      %v1007 = vrot.slane %v1006, 4
      %v1009 = vshll.u32 %v996, 16
      %v1011 = vrot.slane %v1009, 5
      %v1012 = vsel %vm311, %v1007, %v1011
      %v1014 = vshrl.u32 %v997, 16
      %v1016 = vrot.slane %v1014, 4
      %v1017 = vshll.u32 %v997, 16
      %v1019 = vrot.slane %v1017, 5
      %v1020 = vor.u32 %v1016, %v1019
      %v1021 = vrot.slane %v1020, 4
      %v1023 = vshll.u32 %v998, 16
      %v1025 = vrot.slane %v1023, 5
      %v1026 = vsel %vm311, %v1021, %v1025
      %s1027 = scalar_lea.vmem %s2, 448
      %v1028 = vld [vmem:[%s1027] sm:$0xf]
      %v1029 = vld [vmem:[%s1027 + $0x4] sm:$0xf]
      %v1030 = vld [vmem:[%s1027 + $0x8] sm:$0xf]
      %v1031 = vld [vmem:[%s1027 + $0xc] sm:$0xf]
      %v1032 = vld [vmem:[%s1027 + $0x10] sm:$0xf]
      %v1033 = vld [vmem:[%s1027 + $0x14] sm:$0xf]
      %v1034 = vld [vmem:[%s1027 + $0x18] sm:$0xf]
      %v1035 = vld [vmem:[%s1027 + $0x1c] sm:$0xf]
      %v1036 = vld [vmem:[%s1027 + $0x20] sm:$0xf]
      %v1037 = vld [vmem:[%s1027 + $0x24] sm:$0xf]
      %v1038 = vld [vmem:[%s1027 + $0x28] sm:$0xf]
      %v1039 = vld [vmem:[%s1027 + $0x2c] sm:$0xf]
      %v1040 = vld [vmem:[%s1027 + $0x30] sm:$0xf]
      %v1041 = vld [vmem:[%s1027 + $0x34] sm:$0xf]
      %v1042 = vld [vmem:[%s1027 + $0x38] sm:$0xf]
      %v1043 = vld [vmem:[%s1027 + $0x3c] sm:$0xf]
      %v1044 = vunpack.c.l.b16 %v1012
      %v1045 = vunpack.c.l.b16 %v1026
      %v1046 = vpack.c.b16 %v1045, %v1044
      %v1064 = vunpack.c.l.b16 %v1028
      %v1065 = vunpack.c.l.b16 %v1029
      %v1066 = vunpack.c.l.b16 %v1030
      %v1067 = vunpack.c.l.b16 %v1031
      %v1068 = vunpack.c.l.b16 %v1032
      %v1069 = vunpack.c.l.b16 %v1033
      %v1070 = vunpack.c.l.b16 %v1034
      %v1071 = vunpack.c.l.b16 %v1035
      %v1072 = vunpack.c.l.b16 %v1036
      %v1073 = vunpack.c.l.b16 %v1037
      %v1074 = vunpack.c.l.b16 %v1038
      %v1075 = vunpack.c.l.b16 %v1039
      %v1076 = vunpack.c.l.b16 %v1040
      %v1077 = vunpack.c.l.b16 %v1041
      %v1078 = vunpack.c.l.b16 %v1042
      %v1079 = vunpack.c.l.b16 %v1043
      %v1080 = vpack.c.b16 %v1065, %v1064
      %v1081 = vpack.c.b16 %v1067, %v1066
      %v1082 = vpack.c.b16 %v1069, %v1068
      %v1083 = vpack.c.b16 %v1071, %v1070
      %v1084 = vpack.c.b16 %v1073, %v1072
      %v1085 = vpack.c.b16 %v1075, %v1074
      %v1086 = vpack.c.b16 %v1077, %v1076
      %v1087 = vpack.c.b16 %v1079, %v1078
      %1096 = vmatpush.bf16.msra.mxu0 %v1087
      %1097 = vmatpush.bf16.msra.mxu0 %v1086
      %1098 = vmatpush.bf16.msra.mxu0 %v1085
      %1099 = vmatpush.bf16.msra.mxu0 %v1084
      %1100 = vmatpush.bf16.msra.mxu0 %v1083
      %1101 = vmatpush.bf16.msra.mxu0 %v1082
      %1102 = vmatpush.bf16.msra.mxu0 %v1081
      %1103 = vmatpush.bf16.msra.mxu0 %v1080
      %1104 = vmatmul.bf16.gmra.mxu0 %v1046
      %v1105 = vpop.f32.mrf.mxu0
      %v1106 = vadd.f32 0.0, %v1105
      %v1107 = vpop.f32.mrf.mxu0
      %v1108 = vadd.f32 0.0, %v1107
      %1109 = vdwg.mxu0
      %v1110 = vadd.f32 %v993, %v1106
      %v1111 = vadd.f32 %v994, %v1108
      %v1112 = vld [vmem:[%s905] sm:$0xe]
      %v1113 = vld [vmem:[%s905 + $0x8] sm:$0xe]
      %v1118 = vrot.slane %v1112, 5
      %v1119 = vrot.slane %v1118, 4
      %v1120 = vrot.slane %v996, 5
      %v1121 = vsel %vm499, %v1119, %v1120
      %v1122 = vrot.slane %v1113, 5
      %v1123 = vrot.slane %v1122, 4
      %v1124 = vrot.slane %v998, 5
      %v1125 = vsel %vm499, %v1123, %v1124
      %s1126 = scalar_lea.vmem %s2, 512
      %v1127 = vld [vmem:[%s1126] sm:$0xf]
      %v1128 = vld [vmem:[%s1126 + $0x4] sm:$0xf]
      %v1129 = vld [vmem:[%s1126 + $0x8] sm:$0xf]
      %v1130 = vld [vmem:[%s1126 + $0xc] sm:$0xf]
      %v1131 = vld [vmem:[%s1126 + $0x10] sm:$0xf]
      %v1132 = vld [vmem:[%s1126 + $0x14] sm:$0xf]
      %v1133 = vld [vmem:[%s1126 + $0x18] sm:$0xf]
      %v1134 = vld [vmem:[%s1126 + $0x1c] sm:$0xf]
      %v1135 = vld [vmem:[%s1126 + $0x20] sm:$0xf]
      %v1136 = vld [vmem:[%s1126 + $0x24] sm:$0xf]
      %v1137 = vld [vmem:[%s1126 + $0x28] sm:$0xf]
      %v1138 = vld [vmem:[%s1126 + $0x2c] sm:$0xf]
      %v1139 = vld [vmem:[%s1126 + $0x30] sm:$0xf]
      %v1140 = vld [vmem:[%s1126 + $0x34] sm:$0xf]
      %v1141 = vld [vmem:[%s1126 + $0x38] sm:$0xf]
      %v1142 = vld [vmem:[%s1126 + $0x3c] sm:$0xf]
      %v1143 = vunpack.c.l.b16 %v1121
      %v1144 = vunpack.c.l.b16 %v1125
      %v1145 = vpack.c.b16 %v1144, %v1143
      %v1163 = vunpack.c.l.b16 %v1127
      %v1164 = vunpack.c.l.b16 %v1128
      %v1165 = vunpack.c.l.b16 %v1129
      %v1166 = vunpack.c.l.b16 %v1130
      %v1167 = vunpack.c.l.b16 %v1131
      %v1168 = vunpack.c.l.b16 %v1132
      %v1169 = vunpack.c.l.b16 %v1133
      %v1170 = vunpack.c.l.b16 %v1134
      %v1171 = vunpack.c.l.b16 %v1135
      %v1172 = vunpack.c.l.b16 %v1136
      %v1173 = vunpack.c.l.b16 %v1137
      %v1174 = vunpack.c.l.b16 %v1138
      %v1175 = vunpack.c.l.b16 %v1139
      %v1176 = vunpack.c.l.b16 %v1140
      %v1177 = vunpack.c.l.b16 %v1141
      %v1178 = vunpack.c.l.b16 %v1142
      %v1179 = vpack.c.b16 %v1164, %v1163
      %v1180 = vpack.c.b16 %v1166, %v1165
      %v1181 = vpack.c.b16 %v1168, %v1167
      %v1182 = vpack.c.b16 %v1170, %v1169
      %v1183 = vpack.c.b16 %v1172, %v1171
      %v1184 = vpack.c.b16 %v1174, %v1173
      %v1185 = vpack.c.b16 %v1176, %v1175
      %v1186 = vpack.c.b16 %v1178, %v1177
      %1195 = vmatpush.bf16.msra.mxu0 %v1186
      %1196 = vmatpush.bf16.msra.mxu0 %v1185
      %1197 = vmatpush.bf16.msra.mxu0 %v1184
      %1198 = vmatpush.bf16.msra.mxu0 %v1183
      %1199 = vmatpush.bf16.msra.mxu0 %v1182
      %1200 = vmatpush.bf16.msra.mxu0 %v1181
      %1201 = vmatpush.bf16.msra.mxu0 %v1180
      %1202 = vmatpush.bf16.msra.mxu0 %v1179
      %1203 = vmatmul.bf16.gmra.mxu0 %v1145
      %v1204 = vpop.f32.mrf.mxu0
      %v1205 = vadd.f32 0.0, %v1204
      %v1206 = vpop.f32.mrf.mxu0
      %v1207 = vadd.f32 0.0, %v1206
      %1208 = vdwg.mxu0
      %v1209 = vadd.f32 %v1110, %v1205
      %v1210 = vadd.f32 %v1111, %v1207
      %v1211 = vld [vmem:[%s272] sm:$0xf]
      %v1212 = vld [vmem:[%s272 + $0x4] sm:$0xf]
      %v1213 = vld [vmem:[%s3] sm:$0xf]
      %v1216 = vunpack.c.l.b16 %v1211
      %v1217 = vunpack.c.l.b16 %v1212
      %v1218 = vpack.c.b16 %v1217, %v1216
      %vm1219 = vcmask 64512
      %v1221 = vsel %vm1219, %v1218, 0
      %vm1223 = vcmask 1043456
      %v1225 = vsel %vm1223, %v1213, 0
      %1227 = vmatpush.bf16.msra.mxu0 0
      %1228 = vmatpush.bf16.msra.mxu0 0
      %1229 = vmatpush.bf16.msra.mxu0 0
      %1230 = vmatpush.bf16.msra.mxu0 0
      %1231 = vmatpush.bf16.msra.mxu0 0
      %1232 = vmatpush.bf16.msra.mxu0 0
      %1233 = vmatpush.bf16.msra.mxu0 0
      %1234 = vmatpush.bf16.msra.mxu0 %v1225
      %1235 = vmatmul.bf16.gmra.mxu0 %v1221
      %v1236 = vpop.f32.mrf.mxu0
      %v1237 = vadd.f32 0.0, %v1236
      %v1238 = vpop.f32.mrf.mxu0
      %v1239 = vadd.f32 0.0, %v1238
      %1240 = vdwg.mxu0
      %v1241 = vadd.f32 %v1209, %v1237
      %v1242 = vadd.f32 %v1210, %v1239
      %v1243 = vld [vmem:[%s4] sm:$0x1]
      %v1245 = vperm.slane %v1243, 0
      %v1247 = vadd.f32 %v1241, %v1245
      %v1248 = vadd.f32 %v1242, %v1245
      %v1249 = vmax.f32 %v1247, 0.0
      %v1250 = vmax.f32 %v1248, 0.0
      %v1251 = vpack.c.bf16 %v1249, %v1249
      %v1252 = vpack.c.bf16 %v1250, %v1250
      %1253 = vst [vmem:[%s282] sm:$0xf] %v1251
      %1254 = vst [vmem:[%s282 + $0x4] sm:$0xf] %v1252
      %s1255 = smul.u32 2, %s21
      %p1256 = scmp.lt.s32.totalorder %s20, 1
      %s1257 = scalar_select %p1256, %s20, 1
      %p1258 = scmp.lt.s32.totalorder %s1255, 7
      %s1259 = scalar_select %p1258, %s1255, 7
      %s1260 = smul.addr %s1257, 8
      %s1261 = sadd.s32 %s1259, %s1260
      %s1262 = smul.addr %s1261, 4
      %s1263 = scalar_lea.vmem %s5, %s1262
      // Predicated region
      $region41: #{_lambda_.3} parent=39 // pred_check
        %p1264 = pneg %p165
      $region42: #{_lambda_.3} parent=39 // pred_check_branch
        %1266 = sbr.rel (%p1264) target = $region44
      $region43: #{_lambda_.3} parent=39 // pred_region
        %s1267 = smul.u32 2, %s21
      $region44: #{_lambda_.3} parent=39 // pred_fallthru
        _
    $region40: #{_lambda_.3} parent=5 // pred_fallthru
      _
    %p1268 = scmp.le.s32.totalorder 2, %s11
    // Predicated region
    $region45: #{_lambda_.3} parent=5 // pred_check
      %p1269 = pneg %p1268
    $region46: #{_lambda_.3} parent=5 // pred_check_branch
      %1271 = sbr.rel (%p1269) target = $region48
    $region47: #{_lambda_.3} parent=5 // pred_region
      %s1272 = ssub.s32 %s11, 2
      // Predicated region
      $region49: #{_lambda_.3} parent=47 // pred_check
        %p1273 = pneg %p171
      $region50: #{_lambda_.3} parent=47 // pred_check_branch
        %1275 = sbr.rel (%p1273) target = $region52
      $region51: #{_lambda_.3} parent=47 // pred_region
        %s1276 = smul.u32 2, %s23
        %p1277 = scmp.lt.s32.totalorder %s22, 1
        %s1278 = scalar_select %p1277, %s22, 1
        %p1279 = scmp.lt.s32.totalorder %s1276, 7
        %s1280 = scalar_select %p1279, %s1276, 7
        %s1281 = smul.addr %s1278, 8
        %s1282 = sadd.s32 %s1280, %s1281
        %s1283 = smul.addr %s1282, 4
        %s1284 = scalar_lea.vmem %s5, %s1283
      $region52: #{_lambda_.3} parent=47 // pred_fallthru
        _
    $region48: #{_lambda_.3} parent=5 // pred_fallthru
      _
  $region6: #{_lambda_.3} parent=0 // loop_footer
    %s15 = sadd.s32 1, %s11
  $region7: #{_lambda_.3} parent=0 // loop_footer_branch
    %10 = sbr.rel target = $region3
  $region8: #{_lambda_.3} parent=0 // loop_exit
    _

</llo_original>
